<compile_context>
chip_gen: v7x
topology: tpu7x:2x2x1
jax: 0.10.0
libtpu: 0.0.40
codegen_flags: <defaults>
</compile_context>

<pallas_src>
import functools

import jax
import jax.numpy as jnp
from jax import lax
from jax.experimental import pallas as pl
from jax.experimental.pallas import tpu as pltpu

_LANES = 128
_SUBLANES = 8
_ROW_ALIGN = 32            # keeps sublane packing legal for f32/bf16/int8/fp8
_MAX_TILE_ROWS = 4096      # 4096 x 128 x 4B = 2 MiB per f32 input block
_MIN_KERNEL_ELEMS = 64 * 1024   # below this, plain XLA fusion wins


@functools.lru_cache(maxsize=1)
def _num_tensorcores():
    """Best-effort TensorCores-per-chip (2 on v7x-class chips, else 1)."""
    try:
        info = pltpu.get_tpu_info()
        for attr in ("num_cores", "core_count", "num_tensorcores",
                     "num_tensor_cores", "tensorcore_count"):
            v = getattr(info, attr, None)
            if v is not None:
                v = int(v)
                if 1 <= v <= 8:
                    return v
    except Exception:
        pass
    try:
        kind = jax.devices()[0].device_kind.lower()
        if "v7" in kind:
            return 2
    except Exception:
        pass
    return 1


def _round_up(x, m):
    return ((x + m - 1) // m) * m


def _sse_kernel(rows_total, tile_rows, steps_per_split,
                x_ref, t_ref, o_ref):
    """Accumulates per-(sublane, lane) partial sums of (x - t)^2.

    Grid = (num_splits, steps_per_split); the (8, 128) output block of a given
    split stays resident across the inner (reduction) axis and acts as the
    accumulator.  The row mask only runs in the cold boundary branch, so the
    hot path hides entirely under the HBM DMA.
    """
    p = pl.program_id(0)
    i = pl.program_id(1)

    @pl.when(i == 0)
    def _():
        o_ref[...] = jnp.zeros_like(o_ref)

    d = x_ref[...].astype(jnp.float32) - t_ref[...].astype(jnp.float32)
    sq = d * d

    logical_tile = p * steps_per_split + i
    row0 = logical_tile * tile_rows
    interior = (row0 + tile_rows) <= rows_total

    @pl.when(interior)
    def _():
        # Fully-valid tile: unmasked accumulate (no iota / compare / select).
        o_ref[...] += jnp.sum(
            sq.reshape(tile_rows // _SUBLANES, _SUBLANES, _LANES), axis=0)

    @pl.when(jnp.logical_not(interior))
    def _():
        # Boundary tile (ragged last block) or clamped duplicate tile from an
        # uneven megacore split: zero every row whose logical index falls past
        # rows_total.  Zero-padded tail elements (numel % 128 != 0) are already
        # zero, so they contribute nothing.
        row_ids = lax.broadcasted_iota(jnp.int32, sq.shape, 0) + row0
        masked = jnp.where(row_ids < rows_total, sq, 0.0)
        o_ref[...] += jnp.sum(
            masked.reshape(tile_rows // _SUBLANES, _SUBLANES, _LANES), axis=0)


@jax.jit
def _mse_mean_pallas(x, target):
    """mean((x - target)^2) with the reduction done in a Pallas TPU kernel."""
    n = x.size
    assert n < 2 ** 31, "int32 row indexing would overflow"

    x_flat = x.reshape(-1)
    t_flat = target.reshape(-1)

    # The flat reshape is free whenever numel % 128 == 0 (always true for real
    # conv feature maps).  Only in the rare ragged case do we pad to the next
    # lane multiple; zero pad contributes 0 to the SSE.
    # TODO(synk): the ragged-numel path still rewrites both arrays in HBM once.
    if n % _LANES != 0:
        pad = _round_up(n, _LANES) - n
        x_flat = jnp.pad(x_flat, (0, pad))
        t_flat = jnp.pad(t_flat, (0, pad))

    rows = x_flat.shape[0] // _LANES
    x2 = x_flat.reshape(rows, _LANES)
    t2 = t_flat.reshape(rows, _LANES)

    tile_rows = min(_MAX_TILE_ROWS, _round_up(rows, _ROW_ALIGN))
    num_tiles = pl.cdiv(rows, tile_rows)

    num_splits = _num_tensorcores()        # 2 on v7x, 1 on v5e / v6e
    steps = pl.cdiv(num_tiles, num_splits)

    def in_map(p, i):
        # Clamp so the DMA never indexes past the last block; a duplicated
        # read (uneven split) is fully zeroed by the in-kernel row mask.
        return (jnp.minimum(p * steps + i, num_tiles - 1), 0)

    kernel = functools.partial(_sse_kernel, rows, tile_rows, steps)

    partials = pl.pallas_call(
        kernel,
        out_shape=jax.ShapeDtypeStruct((num_splits * _SUBLANES, _LANES),
                                       jnp.float32),
        grid_spec=pltpu.PrefetchScalarGridSpec(
            num_scalar_prefetch=0,
            grid=(num_splits, steps),
            in_specs=[
                pl.BlockSpec((tile_rows, _LANES), in_map),
                pl.BlockSpec((tile_rows, _LANES), in_map),
            ],
            out_specs=pl.BlockSpec((_SUBLANES, _LANES), lambda p, i: (p, 0)),
        ),
        compiler_params=pltpu.CompilerParams(
            dimension_semantics=("parallel", "arbitrary"),
        ),
    )(x2, t2)

    sse = jnp.sum(partials)                # tiny cross-lane reduce, plain JAX
    return sse / jnp.float32(n)


def _mse_mean(x, target):
    assert x.shape == target.shape, "input / target shape mismatch"
    if x.size < _MIN_KERNEL_ELEMS:
        # Kernel launch + pipeline overhead dwarfs the work; let XLA fuse it.
        d = x.astype(jnp.float32) - target.astype(jnp.float32)
        return jnp.mean(d * d)
    return _mse_mean_pallas(x, target)


@jax.custom_vjp
def content_mse(x, target):
    """mean((x - target)^2); differentiable (training-time loss.backward())."""
    return _mse_mean(x, target)


def _content_mse_fwd(x, target):
    return _mse_mean(x, target), (x, target)


def _content_mse_bwd(res, g):
    x, target = res
    diff = x.astype(jnp.float32) - target.astype(jnp.float32)
    dx = (g * (2.0 / x.size)) * diff
    return dx.astype(x.dtype), (-dx).astype(target.dtype)


content_mse.defvjp(_content_mse_fwd, _content_mse_bwd)


class ContentLoss:
    """JAX/Pallas mirror of the PyTorch ContentLoss module."""

    def __init__(self, weight=1.0):
        self.target = None
        self.mode = "learn"
        self.weight = weight     # set externally in the original code
        self.loss = None

    def __call__(self, x):
        if self.mode == "loss":
            # weight applied outside the custom-VJP core so its gradient path
            # stays plain JAX.
            self.loss = self.weight * content_mse(x, self.target)
        elif self.mode == "learn":
            self.target = jax.lax.stop_gradient(x)   # .detach()
        return x


if __name__ == "__main__":
    key = jax.random.PRNGKey(0)
    k1, k2, k3, k4 = jax.random.split(key, 4)

    # --- tiny path (bypasses the kernel; matches the module-scale demo) -----
    content_small = jax.random.normal(k1, (2, 4, 16, 16), dtype=jnp.float32)
    pred_small = jax.random.normal(k2, (2, 4, 16, 16), dtype=jnp.float32)
    layer = ContentLoss(weight=1.0)
    out_learn = layer(content_small)            # 'learn': capture target
    layer.mode = "loss"
    out_small = layer(pred_small)               # 'loss' : weight * MSE
    jax.block_until_ready(out_learn)
    loss_small = jax.block_until_ready(layer.loss)
    ref_small = jnp.mean((pred_small - content_small) ** 2)
    assert jnp.allclose(loss_small, ref_small, rtol=1e-5, atol=1e-6)
    assert out_small is pred_small              # identity pass-through

    # --- Pallas kernel path: realistic VGG-feature-sized slab ---------------
    content_big = jax.random.normal(k3, (2, 64, 32, 32), dtype=jnp.float32)
    pred_big = jax.random.normal(k4, (2, 64, 32, 32), dtype=jnp.float32)
    layer2 = ContentLoss(weight=0.5)
    layer2(content_big)
    layer2.mode = "loss"
    layer2(pred_big)
    loss_big = jax.block_until_ready(layer2.loss)
    ref_big = 0.5 * jnp.mean((pred_big - content_big) ** 2)
    assert jnp.allclose(loss_big, ref_big, rtol=1e-5, atol=1e-6), (loss_big, ref_big)

    # --- kernel path with ragged numel (boundary-mask branch) ---------------
    kc, kp = jax.random.split(k3)
    content_rag = jax.random.normal(kc, (3, 7, 61, 53), dtype=jnp.float32)
    pred_rag = jax.random.normal(kp, (3, 7, 61, 53), dtype=jnp.float32)
    layer3 = ContentLoss(weight=1.0)
    layer3(content_rag)
    layer3.mode = "loss"
    layer3(pred_rag)
    loss_rag = jax.block_until_ready(layer3.loss)
    ref_rag = jnp.mean((pred_rag - content_rag) ** 2)
    assert jnp.allclose(loss_rag, ref_rag, rtol=1e-5, atol=1e-6), (loss_rag, ref_rag)

    # --- bf16 activations (halved HBM traffic; kernel upcasts internally) ---
    loss_bf = jax.block_until_ready(
        content_mse(pred_big.astype(jnp.bfloat16), content_big.astype(jnp.bfloat16)))
    ref_bf = jnp.mean((pred_big.astype(jnp.bfloat16).astype(jnp.float32)
                       - content_big.astype(jnp.bfloat16).astype(jnp.float32)) ** 2)
    assert jnp.allclose(loss_bf, ref_bf, rtol=1e-4, atol=1e-5), (loss_bf, ref_bf)

    # --- gradient through the custom VJP (training-time backward) -----------
    g = jax.grad(lambda a: content_mse(a, content_big))(pred_big)
    g_ref = jax.grad(lambda a: jnp.mean((a - content_big) ** 2))(pred_big)
    g = jax.block_until_ready(g)
    assert jnp.allclose(g, g_ref, rtol=1e-5, atol=1e-6)

    print("KERNEL_OK")
</pallas_src>

<mosaic_0001>
module attributes {stable_mosaic.version = 11 : i64} {
  func.func @_sse_kernel(%arg0: i32, %arg1: i32, %arg2: memref<1024x128xf32, #tpu.memory_space<vmem>>, %arg3: memref<1024x128xf32, #tpu.memory_space<vmem>>, %arg4: memref<8x128xf32, #tpu.memory_space<vmem>>) attributes {dimension_semantics = [#tpu.dimension_semantics<parallel>, #tpu.dimension_semantics<arbitrary>], iteration_bounds = array<i64: 1, 1>, scalar_prefetch = 0 : i64, scratch_operands = 0 : i64, tpu.core_type = #tpu.core_type<tc>, window_params = [{transform_indices = @transform_0, window_bounds = array<i64: 1024, 128>}, {transform_indices = @transform_1, window_bounds = array<i64: 1024, 128>}, {transform_indices = @transform_2, window_bounds = array<i64: 8, 128>}]} {
    %c0_i32 = arith.constant 0 : i32
    %0 = arith.cmpi eq, %arg1, %c0_i32 : i32
    %1 = arith.extui %0 : i1 to i32
    %c0_i32_0 = arith.constant 0 : i32
    %2 = arith.cmpi ne, %1, %c0_i32_0 : i32
    scf.if %2 {
      %cst = arith.constant 0.000000e+00 : f32
      %17 = vector.broadcast %cst : f32 to vector<8x128xf32>
      %c0_8 = arith.constant 0 : index
      %c0_9 = arith.constant 0 : index
      %18 = vector.load %arg4[%c0_8, %c0_9] : memref<8x128xf32, #tpu.memory_space<vmem>>, vector<8x128xf32>
      tpu.vector_store %arg4[%c0_8, %c0_9], %17 {strides = array<i32>} : memref<8x128xf32, #tpu.memory_space<vmem>>, vector<8x128xf32>,
    } else {
    }
    %c0 = arith.constant 0 : index
    %c0_1 = arith.constant 0 : index
    %3 = vector.load %arg2[%c0, %c0_1] : memref<1024x128xf32, #tpu.memory_space<vmem>>, vector<1024x128xf32>
    %c0_2 = arith.constant 0 : index
    %c0_3 = arith.constant 0 : index
    %4 = vector.load %arg3[%c0_2, %c0_3] : memref<1024x128xf32, #tpu.memory_space<vmem>>, vector<1024x128xf32>
    %5 = arith.subf %3, %4 : vector<1024x128xf32>
    %6 = arith.mulf %5, %5 : vector<1024x128xf32>
    %c1_i32 = arith.constant 1 : i32
    %7 = arith.muli %arg0, %c1_i32 : i32
    %8 = arith.addi %7, %arg1 : i32
    %c1024_i32 = arith.constant 1024 : i32
    %9 = arith.muli %8, %c1024_i32 : i32
    %c1024_i32_4 = arith.constant 1024 : i32
    %10 = arith.addi %9, %c1024_i32_4 : i32
    %c1024_i32_5 = arith.constant 1024 : i32
    %11 = arith.cmpi sle, %10, %c1024_i32_5 : i32
    %12 = arith.extui %11 : i1 to i32
    %c0_i32_6 = arith.constant 0 : i32
    %13 = arith.cmpi ne, %12, %c0_i32_6 : i32
    scf.if %13 {
      %c0_8 = arith.constant 0 : index
      %c0_9 = arith.constant 0 : index
      %17 = vector.load %arg4[%c0_8, %c0_9] : memref<8x128xf32, #tpu.memory_space<vmem>>, vector<8x128xf32>
      %18 = vector.shape_cast %6 : vector<1024x128xf32> to vector<128x8x128xf32>
      %cst = arith.constant dense<0.000000e+00> : vector<8x128xf32>
      %19 = vector.multi_reduction <add>, %18, %cst [0] : vector<128x8x128xf32> to vector<8x128xf32>
      %20 = arith.addf %17, %19 : vector<8x128xf32>
      %c0_10 = arith.constant 0 : index
      %c0_11 = arith.constant 0 : index
      %21 = vector.load %arg4[%c0_10, %c0_11] : memref<8x128xf32, #tpu.memory_space<vmem>>, vector<8x128xf32>
      tpu.vector_store %arg4[%c0_10, %c0_11], %20 {strides = array<i32>} : memref<8x128xf32, #tpu.memory_space<vmem>>, vector<8x128xf32>,
    } else {
    }
    %true = arith.constant true
    %14 = arith.xori %11, %true : i1
    %15 = arith.extui %14 : i1 to i32
    %c0_i32_7 = arith.constant 0 : i32
    %16 = arith.cmpi ne, %15, %c0_i32_7 : i32
    scf.if %16 {
      %17 = tpu.iota {dimensions = array<i32: 0>} : vector<1024x128xi32>
      %18 = vector.broadcast %9 : i32 to vector<1024x128xi32>
      %19 = arith.addi %17, %18 : vector<1024x128xi32>
      %c1024_i32_8 = arith.constant 1024 : i32
      %20 = vector.broadcast %c1024_i32_8 : i32 to vector<1024x128xi32>
      %21 = arith.cmpi slt, %19, %20 : vector<1024x128xi32>
      %cst = arith.constant 0.000000e+00 : f32
      %22 = vector.broadcast %cst : f32 to vector<1024x128xf32>
      %23 = arith.select %21, %6, %22 : vector<1024x128xi1>, vector<1024x128xf32>
      %c0_9 = arith.constant 0 : index
      %c0_10 = arith.constant 0 : index
      %24 = vector.load %arg4[%c0_9, %c0_10] : memref<8x128xf32, #tpu.memory_space<vmem>>, vector<8x128xf32>
      %25 = vector.shape_cast %23 : vector<1024x128xf32> to vector<128x8x128xf32>
      %cst_11 = arith.constant dense<0.000000e+00> : vector<8x128xf32>
      %26 = vector.multi_reduction <add>, %25, %cst_11 [0] : vector<128x8x128xf32> to vector<8x128xf32>
      %27 = arith.addf %24, %26 : vector<8x128xf32>
      %c0_12 = arith.constant 0 : index
      %c0_13 = arith.constant 0 : index
      %28 = vector.load %arg4[%c0_12, %c0_13] : memref<8x128xf32, #tpu.memory_space<vmem>>, vector<8x128xf32>
      tpu.vector_store %arg4[%c0_12, %c0_13], %27 {strides = array<i32>} : memref<8x128xf32, #tpu.memory_space<vmem>>, vector<8x128xf32>,
    } else {
    }
    return
  }
  func.func @transform_0(%arg0: i32, %arg1: i32) -> (i32, i32) {
    %c1_i32 = arith.constant 1 : i32
    %0 = arith.muli %arg0, %c1_i32 : i32
    %1 = arith.addi %0, %arg1 : i32
    %c0_i32 = arith.constant 0 : i32
    %2 = arith.minsi %1, %c0_i32 : i32
    %c0_i32_0 = arith.constant 0 : i32
    %c0_i32_1 = arith.constant 0 : i32
    return %2, %c0_i32_0 : i32, i32
  }
  func.func @transform_1(%arg0: i32, %arg1: i32) -> (i32, i32) {
    %c1_i32 = arith.constant 1 : i32
    %0 = arith.muli %arg0, %c1_i32 : i32
    %1 = arith.addi %0, %arg1 : i32
    %c0_i32 = arith.constant 0 : i32
    %2 = arith.minsi %1, %c0_i32 : i32
    %c0_i32_0 = arith.constant 0 : i32
    %c0_i32_1 = arith.constant 0 : i32
    return %2, %c0_i32_0 : i32, i32
  }
  func.func @transform_2(%arg0: i32, %arg1: i32) -> (i32, i32) {
    %c0_i32 = arith.constant 0 : i32
    %c0_i32_0 = arith.constant 0 : i32
    return %arg0, %c0_i32 : i32, i32
  }
}

</mosaic_0001>

<llo_original>
// kernel: _mse_mean_pallas.1
$region0: #{_mse_mean_pallas.1}
  #allocation0 [shape = 'u32[]', space=smem, size = 0x4, offset = 0x4, fixed_abs, tag = 'smem constant byte address 0x4 - core index']
  #allocation1 [shape = 'u32[144,128]{1,0:T(1,128)}', space=vmem, size = 0x12000, scoped, tag = 'internal scratch']
  %s0 = inlined_call_operand.vmem [shape: f32[1024,128], index: 0, kind: input, shape index: {}]
  %s1 = inlined_call_operand.vmem [shape: f32[1024,128], index: 1, kind: input, shape index: {}]
  %s2 = inlined_call_operand.vmem [shape: f32[8,128], index: 2, kind: output, shape index: {}]
  %s3 = sld [smem:[#allocation0]]
  $region30: #{_mse_mean_pallas.1} parent=0
    _
  %s5 = ssub.s32 1, %s3
  %s6 = scalar_select 0, %s5, %s3
  // Predicated region
  $region2: #{_mse_mean_pallas.1} parent=0 // pred_check
    _
  $region3: #{_mse_mean_pallas.1} parent=0 // pred_check_branch
    %8 = sbr.rel (0) target = $region5
  $region4: #{_mse_mean_pallas.1} parent=0 // pred_region
    %s9 = sadd.s32 0, 0
    %p10 = scmp.lt.s32.totalorder %s9, 0
    %s11 = scalar_select %p10, %s9, 0
    %s12 = smul.u32 128, %s11
    %p13 = scmp.lt.s32.totalorder %s12, 127
    %s14 = scalar_select %p13, %s12, 127
    %s15 = smul.addr %s14, 8
    %s16 = scalar_lea.vmem %s0, %s15
    %s17 = sadd.s32 0, 0
    %p18 = scmp.lt.s32.totalorder %s17, 0
    %s19 = scalar_select %p18, %s17, 0
    %s20 = smul.u32 128, %s19
  $region5: #{_mse_mean_pallas.1} parent=0 // pred_fallthru
    _
  // Predicated region
  $region6: #{_mse_mean_pallas.1} parent=0 // pred_check
    _
  $region7: #{_mse_mean_pallas.1} parent=0 // pred_check_branch
    %22 = sbr.rel (0) target = $region9
  $region8: #{_mse_mean_pallas.1} parent=0 // pred_region
    %s23 = sadd.s32 0, 0
    %p24 = scmp.lt.s32.totalorder %s23, 0
    %s25 = scalar_select %p24, %s23, 0
    %s26 = smul.u32 128, %s25
    %p27 = scmp.lt.s32.totalorder %s26, 127
    %s28 = scalar_select %p27, %s26, 127
    %s29 = smul.addr %s28, 8
    %s30 = scalar_lea.vmem %s1, %s29
    %s31 = sadd.s32 0, 0
    %p32 = scmp.lt.s32.totalorder %s31, 0
    %s33 = scalar_select %p32, %s31, 0
    %s34 = smul.u32 128, %s33
  $region9: #{_mse_mean_pallas.1} parent=0 // pred_fallthru
    _
  %s35 = sadd.s32 0, 0
  %p36 = scmp.lt.s32.totalorder %s35, 0
  %s37 = scalar_select %p36, %s35, 0
  %s38 = smul.u32 128, %s37
  %p39 = scmp.lt.s32.totalorder %s38, 127
  %s40 = scalar_select %p39, %s38, 127
  %s41 = smul.addr %s40, 8
  %s42 = scalar_lea.vmem %s0, %s41
  %s43 = sadd.s32 0, 0
  %p44 = scmp.lt.s32.totalorder %s43, 0
  %s45 = scalar_select %p44, %s43, 0
  %s46 = smul.u32 128, %s45
  %p47 = scmp.lt.s32.totalorder %s46, 127
  %s48 = scalar_select %p47, %s46, 127
  %s49 = smul.addr %s48, 8
  %s50 = scalar_lea.vmem %s1, %s49
  %s51 = sadd.s32 0, 0
  %p52 = scmp.lt.s32.totalorder %s51, 0
  %s53 = scalar_select %p52, %s51, 0
  %s54 = smul.u32 128, %s53
  %p55 = scmp.lt.s32.totalorder %s54, 127
  %s56 = scalar_select %p55, %s54, 127
  %s57 = smul.addr %s56, 8
  %s58 = scalar_lea.vmem %s0, %s57
  %s59 = sadd.s32 0, 0
  %p60 = scmp.lt.s32.totalorder %s59, 0
  %s61 = scalar_select %p60, %s59, 0
  %s62 = smul.u32 128, %s61
  %s63 = sadd.s32 0, 0
  %p64 = scmp.lt.s32.totalorder %s63, 0
  %s65 = scalar_select %p64, %s63, 0
  %s66 = smul.u32 128, %s65
  %p67 = scmp.lt.s32.totalorder %s66, 127
  %s68 = scalar_select %p67, %s66, 127
  %s69 = smul.addr %s68, 8
  %s70 = scalar_lea.vmem %s1, %s69
  %s71 = sadd.s32 0, 0
  %p72 = scmp.lt.s32.totalorder %s71, 0
  %s73 = scalar_select %p72, %s71, 0
  %s74 = smul.u32 128, %s73
  %p75 = scmp.eq.s32.totalorder 0, 0
  // Predicated region
  $region10: #{_mse_mean_pallas.1} parent=0 // pred_check
    %p76 = pneg %p75
  $region11: #{_mse_mean_pallas.1} parent=0 // pred_check_branch
    %78 = sbr.rel (%p76) target = $region13
  $region12: #{_mse_mean_pallas.1} parent=0 // pred_region
    %79 = vst [vmem:[%s2] sm:$0xff] 0.0
  $region13: #{_mse_mean_pallas.1} parent=0 // pred_fallthru
    _
  %v80 = vld [vmem:[%s58] sm:$0xff]
  %v81 = vld [vmem:[%s58 + $0x8] sm:$0xff]
  %v82 = vld [vmem:[%s58 + $0x10] sm:$0xff]
  %v83 = vld [vmem:[%s58 + $0x18] sm:$0xff]
  %v84 = vld [vmem:[%s58 + $0x20] sm:$0xff]
  %v85 = vld [vmem:[%s58 + $0x28] sm:$0xff]
  %v86 = vld [vmem:[%s58 + $0x30] sm:$0xff]
  %v87 = vld [vmem:[%s58 + $0x38] sm:$0xff]
  %v88 = vld [vmem:[%s58 + $0x40] sm:$0xff]
  %v89 = vld [vmem:[%s58 + $0x48] sm:$0xff]
  %v90 = vld [vmem:[%s58 + $0x50] sm:$0xff]
  %v91 = vld [vmem:[%s58 + $0x58] sm:$0xff]
  %v92 = vld [vmem:[%s58 + $0x60] sm:$0xff]
  %v93 = vld [vmem:[%s58 + $0x68] sm:$0xff]
  %v94 = vld [vmem:[%s58 + $0x70] sm:$0xff]
  %v95 = vld [vmem:[%s58 + $0x78] sm:$0xff]
  %v96 = vld [vmem:[%s58 + $0x80] sm:$0xff]
  %v97 = vld [vmem:[%s58 + $0x88] sm:$0xff]
  %v98 = vld [vmem:[%s58 + $0x90] sm:$0xff]
  %v99 = vld [vmem:[%s58 + $0x98] sm:$0xff]
  %v100 = vld [vmem:[%s58 + $0xa0] sm:$0xff]
  %v101 = vld [vmem:[%s58 + $0xa8] sm:$0xff]
  %v102 = vld [vmem:[%s58 + $0xb0] sm:$0xff]
  %v103 = vld [vmem:[%s58 + $0xb8] sm:$0xff]
  %v104 = vld [vmem:[%s58 + $0xc0] sm:$0xff]
  %v105 = vld [vmem:[%s58 + $0xc8] sm:$0xff]
  %v106 = vld [vmem:[%s58 + $0xd0] sm:$0xff]
  %v107 = vld [vmem:[%s58 + $0xd8] sm:$0xff]
  %v108 = vld [vmem:[%s58 + $0xe0] sm:$0xff]
  %v109 = vld [vmem:[%s58 + $0xe8] sm:$0xff]
  %v110 = vld [vmem:[%s58 + $0xf0] sm:$0xff]
  %v111 = vld [vmem:[%s58 + $0xf8] sm:$0xff]
  %v112 = vld [vmem:[%s58 + $0x100] sm:$0xff]
  %v113 = vld [vmem:[%s58 + $0x108] sm:$0xff]
  %v114 = vld [vmem:[%s58 + $0x110] sm:$0xff]
  %v115 = vld [vmem:[%s58 + $0x118] sm:$0xff]
  %v116 = vld [vmem:[%s58 + $0x120] sm:$0xff]
  %v117 = vld [vmem:[%s58 + $0x128] sm:$0xff]
  %v118 = vld [vmem:[%s58 + $0x130] sm:$0xff]
  %v119 = vld [vmem:[%s58 + $0x138] sm:$0xff]
  %v120 = vld [vmem:[%s58 + $0x140] sm:$0xff]
  %v121 = vld [vmem:[%s58 + $0x148] sm:$0xff]
  %v122 = vld [vmem:[%s58 + $0x150] sm:$0xff]
  %v123 = vld [vmem:[%s58 + $0x158] sm:$0xff]
  %v124 = vld [vmem:[%s58 + $0x160] sm:$0xff]
  %v125 = vld [vmem:[%s58 + $0x168] sm:$0xff]
  %v126 = vld [vmem:[%s58 + $0x170] sm:$0xff]
  %v127 = vld [vmem:[%s58 + $0x178] sm:$0xff]
  %v128 = vld [vmem:[%s58 + $0x180] sm:$0xff]
  %v129 = vld [vmem:[%s58 + $0x188] sm:$0xff]
  %v130 = vld [vmem:[%s58 + $0x190] sm:$0xff]
  %v131 = vld [vmem:[%s58 + $0x198] sm:$0xff]
  %v132 = vld [vmem:[%s58 + $0x1a0] sm:$0xff]
  %v133 = vld [vmem:[%s58 + $0x1a8] sm:$0xff]
  %v134 = vld [vmem:[%s58 + $0x1b0] sm:$0xff]
  %v135 = vld [vmem:[%s58 + $0x1b8] sm:$0xff]
  %v136 = vld [vmem:[%s58 + $0x1c0] sm:$0xff]
  %v137 = vld [vmem:[%s58 + $0x1c8] sm:$0xff]
  %v138 = vld [vmem:[%s58 + $0x1d0] sm:$0xff]
  %v139 = vld [vmem:[%s58 + $0x1d8] sm:$0xff]
  %v140 = vld [vmem:[%s58 + $0x1e0] sm:$0xff]
  %v141 = vld [vmem:[%s58 + $0x1e8] sm:$0xff]
  %v142 = vld [vmem:[%s58 + $0x1f0] sm:$0xff]
  %v143 = vld [vmem:[%s58 + $0x1f8] sm:$0xff]
  %v144 = vld [vmem:[%s58 + $0x200] sm:$0xff]
  %v145 = vld [vmem:[%s58 + $0x208] sm:$0xff]
  %v146 = vld [vmem:[%s58 + $0x210] sm:$0xff]
  %v147 = vld [vmem:[%s58 + $0x218] sm:$0xff]
  %v148 = vld [vmem:[%s58 + $0x220] sm:$0xff]
  %v149 = vld [vmem:[%s58 + $0x228] sm:$0xff]
  %v150 = vld [vmem:[%s58 + $0x230] sm:$0xff]
  %v151 = vld [vmem:[%s58 + $0x238] sm:$0xff]
  %v152 = vld [vmem:[%s58 + $0x240] sm:$0xff]
  %v153 = vld [vmem:[%s58 + $0x248] sm:$0xff]
  %v154 = vld [vmem:[%s58 + $0x250] sm:$0xff]
  %v155 = vld [vmem:[%s58 + $0x258] sm:$0xff]
  %v156 = vld [vmem:[%s58 + $0x260] sm:$0xff]
  %v157 = vld [vmem:[%s58 + $0x268] sm:$0xff]
  %v158 = vld [vmem:[%s58 + $0x270] sm:$0xff]
  %v159 = vld [vmem:[%s58 + $0x278] sm:$0xff]
  %v160 = vld [vmem:[%s58 + $0x280] sm:$0xff]
  %v161 = vld [vmem:[%s58 + $0x288] sm:$0xff]
  %v162 = vld [vmem:[%s58 + $0x290] sm:$0xff]
  %v163 = vld [vmem:[%s58 + $0x298] sm:$0xff]
  %v164 = vld [vmem:[%s58 + $0x2a0] sm:$0xff]
  %v165 = vld [vmem:[%s58 + $0x2a8] sm:$0xff]
  %v166 = vld [vmem:[%s58 + $0x2b0] sm:$0xff]
  %v167 = vld [vmem:[%s58 + $0x2b8] sm:$0xff]
  %v168 = vld [vmem:[%s58 + $0x2c0] sm:$0xff]
  %v169 = vld [vmem:[%s58 + $0x2c8] sm:$0xff]
  %v170 = vld [vmem:[%s58 + $0x2d0] sm:$0xff]
  %v171 = vld [vmem:[%s58 + $0x2d8] sm:$0xff]
  %v172 = vld [vmem:[%s58 + $0x2e0] sm:$0xff]
  %v173 = vld [vmem:[%s58 + $0x2e8] sm:$0xff]
  %v174 = vld [vmem:[%s58 + $0x2f0] sm:$0xff]
  %v175 = vld [vmem:[%s58 + $0x2f8] sm:$0xff]
  %v176 = vld [vmem:[%s58 + $0x300] sm:$0xff]
  %v177 = vld [vmem:[%s58 + $0x308] sm:$0xff]
  %v178 = vld [vmem:[%s58 + $0x310] sm:$0xff]
  %v179 = vld [vmem:[%s58 + $0x318] sm:$0xff]
  %v180 = vld [vmem:[%s58 + $0x320] sm:$0xff]
  %v181 = vld [vmem:[%s58 + $0x328] sm:$0xff]
  %v182 = vld [vmem:[%s58 + $0x330] sm:$0xff]
  %v183 = vld [vmem:[%s58 + $0x338] sm:$0xff]
  %v184 = vld [vmem:[%s58 + $0x340] sm:$0xff]
  %v185 = vld [vmem:[%s58 + $0x348] sm:$0xff]
  %v186 = vld [vmem:[%s58 + $0x350] sm:$0xff]
  %v187 = vld [vmem:[%s58 + $0x358] sm:$0xff]
  %v188 = vld [vmem:[%s58 + $0x360] sm:$0xff]
  %v189 = vld [vmem:[%s58 + $0x368] sm:$0xff]
  %v190 = vld [vmem:[%s58 + $0x370] sm:$0xff]
  %v191 = vld [vmem:[%s58 + $0x378] sm:$0xff]
  %v192 = vld [vmem:[%s58 + $0x380] sm:$0xff]
  %v193 = vld [vmem:[%s58 + $0x388] sm:$0xff]
  %v194 = vld [vmem:[%s58 + $0x390] sm:$0xff]
  %v195 = vld [vmem:[%s58 + $0x398] sm:$0xff]
  %v196 = vld [vmem:[%s58 + $0x3a0] sm:$0xff]
  %v197 = vld [vmem:[%s58 + $0x3a8] sm:$0xff]
  %v198 = vld [vmem:[%s58 + $0x3b0] sm:$0xff]
  %v199 = vld [vmem:[%s58 + $0x3b8] sm:$0xff]
  %v200 = vld [vmem:[%s58 + $0x3c0] sm:$0xff]
  %v201 = vld [vmem:[%s58 + $0x3c8] sm:$0xff]
  %v202 = vld [vmem:[%s58 + $0x3d0] sm:$0xff]
  %v203 = vld [vmem:[%s58 + $0x3d8] sm:$0xff]
  %v204 = vld [vmem:[%s58 + $0x3e0] sm:$0xff]
  %v205 = vld [vmem:[%s58 + $0x3e8] sm:$0xff]
  %v206 = vld [vmem:[%s58 + $0x3f0] sm:$0xff]
  %v207 = vld [vmem:[%s58 + $0x3f8] sm:$0xff]
  %v208 = vld [vmem:[%s70] sm:$0xff]
  %v209 = vld [vmem:[%s70 + $0x8] sm:$0xff]
  %v210 = vld [vmem:[%s70 + $0x10] sm:$0xff]
  %v211 = vld [vmem:[%s70 + $0x18] sm:$0xff]
  %v212 = vld [vmem:[%s70 + $0x20] sm:$0xff]
  %v213 = vld [vmem:[%s70 + $0x28] sm:$0xff]
  %v214 = vld [vmem:[%s70 + $0x30] sm:$0xff]
  %v215 = vld [vmem:[%s70 + $0x38] sm:$0xff]
  %v216 = vld [vmem:[%s70 + $0x40] sm:$0xff]
  %v217 = vld [vmem:[%s70 + $0x48] sm:$0xff]
  %v218 = vld [vmem:[%s70 + $0x50] sm:$0xff]
  %v219 = vld [vmem:[%s70 + $0x58] sm:$0xff]
  %v220 = vld [vmem:[%s70 + $0x60] sm:$0xff]
  %v221 = vld [vmem:[%s70 + $0x68] sm:$0xff]
  %v222 = vld [vmem:[%s70 + $0x70] sm:$0xff]
  %v223 = vld [vmem:[%s70 + $0x78] sm:$0xff]
  %v224 = vld [vmem:[%s70 + $0x80] sm:$0xff]
  %v225 = vld [vmem:[%s70 + $0x88] sm:$0xff]
  %v226 = vld [vmem:[%s70 + $0x90] sm:$0xff]
  %v227 = vld [vmem:[%s70 + $0x98] sm:$0xff]
  %v228 = vld [vmem:[%s70 + $0xa0] sm:$0xff]
  %v229 = vld [vmem:[%s70 + $0xa8] sm:$0xff]
  %v230 = vld [vmem:[%s70 + $0xb0] sm:$0xff]
  %v231 = vld [vmem:[%s70 + $0xb8] sm:$0xff]
  %v232 = vld [vmem:[%s70 + $0xc0] sm:$0xff]
  %v233 = vld [vmem:[%s70 + $0xc8] sm:$0xff]
  %v234 = vld [vmem:[%s70 + $0xd0] sm:$0xff]
  %v235 = vld [vmem:[%s70 + $0xd8] sm:$0xff]
  %v236 = vld [vmem:[%s70 + $0xe0] sm:$0xff]
  %v237 = vld [vmem:[%s70 + $0xe8] sm:$0xff]
  %v238 = vld [vmem:[%s70 + $0xf0] sm:$0xff]
  %v239 = vld [vmem:[%s70 + $0xf8] sm:$0xff]
  %v240 = vld [vmem:[%s70 + $0x100] sm:$0xff]
  %v241 = vld [vmem:[%s70 + $0x108] sm:$0xff]
  %v242 = vld [vmem:[%s70 + $0x110] sm:$0xff]
  %v243 = vld [vmem:[%s70 + $0x118] sm:$0xff]
  %v244 = vld [vmem:[%s70 + $0x120] sm:$0xff]
  %v245 = vld [vmem:[%s70 + $0x128] sm:$0xff]
  %v246 = vld [vmem:[%s70 + $0x130] sm:$0xff]
  %v247 = vld [vmem:[%s70 + $0x138] sm:$0xff]
  %v248 = vld [vmem:[%s70 + $0x140] sm:$0xff]
  %v249 = vld [vmem:[%s70 + $0x148] sm:$0xff]
  %v250 = vld [vmem:[%s70 + $0x150] sm:$0xff]
  %v251 = vld [vmem:[%s70 + $0x158] sm:$0xff]
  %v252 = vld [vmem:[%s70 + $0x160] sm:$0xff]
  %v253 = vld [vmem:[%s70 + $0x168] sm:$0xff]
  %v254 = vld [vmem:[%s70 + $0x170] sm:$0xff]
  %v255 = vld [vmem:[%s70 + $0x178] sm:$0xff]
  %v256 = vld [vmem:[%s70 + $0x180] sm:$0xff]
  %v257 = vld [vmem:[%s70 + $0x188] sm:$0xff]
  %v258 = vld [vmem:[%s70 + $0x190] sm:$0xff]
  %v259 = vld [vmem:[%s70 + $0x198] sm:$0xff]
  %v260 = vld [vmem:[%s70 + $0x1a0] sm:$0xff]
  %v261 = vld [vmem:[%s70 + $0x1a8] sm:$0xff]
  %v262 = vld [vmem:[%s70 + $0x1b0] sm:$0xff]
  %v263 = vld [vmem:[%s70 + $0x1b8] sm:$0xff]
  %v264 = vld [vmem:[%s70 + $0x1c0] sm:$0xff]
  %v265 = vld [vmem:[%s70 + $0x1c8] sm:$0xff]
  %v266 = vld [vmem:[%s70 + $0x1d0] sm:$0xff]
  %v267 = vld [vmem:[%s70 + $0x1d8] sm:$0xff]
  %v268 = vld [vmem:[%s70 + $0x1e0] sm:$0xff]
  %v269 = vld [vmem:[%s70 + $0x1e8] sm:$0xff]
  %v270 = vld [vmem:[%s70 + $0x1f0] sm:$0xff]
  %v271 = vld [vmem:[%s70 + $0x1f8] sm:$0xff]
  %v272 = vld [vmem:[%s70 + $0x200] sm:$0xff]
  %v273 = vld [vmem:[%s70 + $0x208] sm:$0xff]
  %v274 = vld [vmem:[%s70 + $0x210] sm:$0xff]
  %v275 = vld [vmem:[%s70 + $0x218] sm:$0xff]
  %v276 = vld [vmem:[%s70 + $0x220] sm:$0xff]
  %v277 = vld [vmem:[%s70 + $0x228] sm:$0xff]
  %v278 = vld [vmem:[%s70 + $0x230] sm:$0xff]
  %v279 = vld [vmem:[%s70 + $0x238] sm:$0xff]
  %v280 = vld [vmem:[%s70 + $0x240] sm:$0xff]
  %v281 = vld [vmem:[%s70 + $0x248] sm:$0xff]
  %v282 = vld [vmem:[%s70 + $0x250] sm:$0xff]
  %v283 = vld [vmem:[%s70 + $0x258] sm:$0xff]
  %v284 = vld [vmem:[%s70 + $0x260] sm:$0xff]
  %v285 = vld [vmem:[%s70 + $0x268] sm:$0xff]
  %v286 = vld [vmem:[%s70 + $0x270] sm:$0xff]
  %v287 = vld [vmem:[%s70 + $0x278] sm:$0xff]
  %v288 = vld [vmem:[%s70 + $0x280] sm:$0xff]
  %v289 = vld [vmem:[%s70 + $0x288] sm:$0xff]
  %v290 = vld [vmem:[%s70 + $0x290] sm:$0xff]
  %v291 = vld [vmem:[%s70 + $0x298] sm:$0xff]
  %v292 = vld [vmem:[%s70 + $0x2a0] sm:$0xff]
  %v293 = vld [vmem:[%s70 + $0x2a8] sm:$0xff]
  %v294 = vld [vmem:[%s70 + $0x2b0] sm:$0xff]
  %v295 = vld [vmem:[%s70 + $0x2b8] sm:$0xff]
  %v296 = vld [vmem:[%s70 + $0x2c0] sm:$0xff]
  %v297 = vld [vmem:[%s70 + $0x2c8] sm:$0xff]
  %v298 = vld [vmem:[%s70 + $0x2d0] sm:$0xff]
  %v299 = vld [vmem:[%s70 + $0x2d8] sm:$0xff]
  %v300 = vld [vmem:[%s70 + $0x2e0] sm:$0xff]
  %v301 = vld [vmem:[%s70 + $0x2e8] sm:$0xff]
  %v302 = vld [vmem:[%s70 + $0x2f0] sm:$0xff]
  %v303 = vld [vmem:[%s70 + $0x2f8] sm:$0xff]
  %v304 = vld [vmem:[%s70 + $0x300] sm:$0xff]
  %v305 = vld [vmem:[%s70 + $0x308] sm:$0xff]
  %v306 = vld [vmem:[%s70 + $0x310] sm:$0xff]
  %v307 = vld [vmem:[%s70 + $0x318] sm:$0xff]
  %v308 = vld [vmem:[%s70 + $0x320] sm:$0xff]
  %v309 = vld [vmem:[%s70 + $0x328] sm:$0xff]
  %v310 = vld [vmem:[%s70 + $0x330] sm:$0xff]
  %v311 = vld [vmem:[%s70 + $0x338] sm:$0xff]
  %v312 = vld [vmem:[%s70 + $0x340] sm:$0xff]
  %v313 = vld [vmem:[%s70 + $0x348] sm:$0xff]
  %v314 = vld [vmem:[%s70 + $0x350] sm:$0xff]
  %v315 = vld [vmem:[%s70 + $0x358] sm:$0xff]
  %v316 = vld [vmem:[%s70 + $0x360] sm:$0xff]
  %v317 = vld [vmem:[%s70 + $0x368] sm:$0xff]
  %v318 = vld [vmem:[%s70 + $0x370] sm:$0xff]
  %v319 = vld [vmem:[%s70 + $0x378] sm:$0xff]
  %v320 = vld [vmem:[%s70 + $0x380] sm:$0xff]
  %v321 = vld [vmem:[%s70 + $0x388] sm:$0xff]
  %v322 = vld [vmem:[%s70 + $0x390] sm:$0xff]
  %v323 = vld [vmem:[%s70 + $0x398] sm:$0xff]
  %v324 = vld [vmem:[%s70 + $0x3a0] sm:$0xff]
  %v325 = vld [vmem:[%s70 + $0x3a8] sm:$0xff]
  %v326 = vld [vmem:[%s70 + $0x3b0] sm:$0xff]
  %v327 = vld [vmem:[%s70 + $0x3b8] sm:$0xff]
  %v328 = vld [vmem:[%s70 + $0x3c0] sm:$0xff]
  %v329 = vld [vmem:[%s70 + $0x3c8] sm:$0xff]
  %v330 = vld [vmem:[%s70 + $0x3d0] sm:$0xff]
  %v331 = vld [vmem:[%s70 + $0x3d8] sm:$0xff]
  %v332 = vld [vmem:[%s70 + $0x3e0] sm:$0xff]
  %v333 = vld [vmem:[%s70 + $0x3e8] sm:$0xff]
  %v334 = vld [vmem:[%s70 + $0x3f0] sm:$0xff]
  %v335 = vld [vmem:[%s70 + $0x3f8] sm:$0xff]
  %v336 = vsub.f32 %v80, %v208
  %v337 = vsub.f32 %v81, %v209
  %v338 = vsub.f32 %v82, %v210
  %v339 = vsub.f32 %v83, %v211
  %v340 = vsub.f32 %v84, %v212
  %v341 = vsub.f32 %v85, %v213
  %v342 = vsub.f32 %v86, %v214
  %v343 = vsub.f32 %v87, %v215
  %v344 = vsub.f32 %v88, %v216
  %v345 = vsub.f32 %v89, %v217
  %v346 = vsub.f32 %v90, %v218
  %v347 = vsub.f32 %v91, %v219
  %v348 = vsub.f32 %v92, %v220
  %v349 = vsub.f32 %v93, %v221
  %v350 = vsub.f32 %v94, %v222
  %v351 = vsub.f32 %v95, %v223
  %v352 = vsub.f32 %v96, %v224
  %v353 = vsub.f32 %v97, %v225
  %v354 = vsub.f32 %v98, %v226
  %v355 = vsub.f32 %v99, %v227
  %v356 = vsub.f32 %v100, %v228
  %v357 = vsub.f32 %v101, %v229
  %v358 = vsub.f32 %v102, %v230
  %v359 = vsub.f32 %v103, %v231
  %v360 = vsub.f32 %v104, %v232
  %v361 = vsub.f32 %v105, %v233
  %v362 = vsub.f32 %v106, %v234
  %v363 = vsub.f32 %v107, %v235
  %v364 = vsub.f32 %v108, %v236
  %v365 = vsub.f32 %v109, %v237
  %v366 = vsub.f32 %v110, %v238
  %v367 = vsub.f32 %v111, %v239
  %v368 = vsub.f32 %v112, %v240
  %v369 = vsub.f32 %v113, %v241
  %v370 = vsub.f32 %v114, %v242
  %v371 = vsub.f32 %v115, %v243
  %v372 = vsub.f32 %v116, %v244
  %v373 = vsub.f32 %v117, %v245
  %v374 = vsub.f32 %v118, %v246
  %v375 = vsub.f32 %v119, %v247
  %v376 = vsub.f32 %v120, %v248
  %v377 = vsub.f32 %v121, %v249
  %v378 = vsub.f32 %v122, %v250
  %v379 = vsub.f32 %v123, %v251
  %v380 = vsub.f32 %v124, %v252
  %v381 = vsub.f32 %v125, %v253
  %v382 = vsub.f32 %v126, %v254
  %v383 = vsub.f32 %v127, %v255
  %v384 = vsub.f32 %v128, %v256
  %v385 = vsub.f32 %v129, %v257
  %v386 = vsub.f32 %v130, %v258
  %v387 = vsub.f32 %v131, %v259
  %v388 = vsub.f32 %v132, %v260
  %v389 = vsub.f32 %v133, %v261
  %v390 = vsub.f32 %v134, %v262
  %v391 = vsub.f32 %v135, %v263
  %v392 = vsub.f32 %v136, %v264
  %v393 = vsub.f32 %v137, %v265
  %v394 = vsub.f32 %v138, %v266
  %v395 = vsub.f32 %v139, %v267
  %v396 = vsub.f32 %v140, %v268
  %v397 = vsub.f32 %v141, %v269
  %v398 = vsub.f32 %v142, %v270
  %v399 = vsub.f32 %v143, %v271
  %v400 = vsub.f32 %v144, %v272
  %v401 = vsub.f32 %v145, %v273
  %v402 = vsub.f32 %v146, %v274
  %v403 = vsub.f32 %v147, %v275
  %v404 = vsub.f32 %v148, %v276
  %v405 = vsub.f32 %v149, %v277
  %v406 = vsub.f32 %v150, %v278
  %v407 = vsub.f32 %v151, %v279
  %v408 = vsub.f32 %v152, %v280
  %v409 = vsub.f32 %v153, %v281
  %v410 = vsub.f32 %v154, %v282
  %v411 = vsub.f32 %v155, %v283
  %v412 = vsub.f32 %v156, %v284
  %v413 = vsub.f32 %v157, %v285
  %v414 = vsub.f32 %v158, %v286
  %v415 = vsub.f32 %v159, %v287
  %v416 = vsub.f32 %v160, %v288
  %v417 = vsub.f32 %v161, %v289
  %v418 = vsub.f32 %v162, %v290
  %v419 = vsub.f32 %v163, %v291
  %v420 = vsub.f32 %v164, %v292
  %v421 = vsub.f32 %v165, %v293
  %v422 = vsub.f32 %v166, %v294
  %v423 = vsub.f32 %v167, %v295
  %v424 = vsub.f32 %v168, %v296
  %v425 = vsub.f32 %v169, %v297
  %v426 = vsub.f32 %v170, %v298
  %v427 = vsub.f32 %v171, %v299
  %v428 = vsub.f32 %v172, %v300
  %v429 = vsub.f32 %v173, %v301
  %v430 = vsub.f32 %v174, %v302
  %v431 = vsub.f32 %v175, %v303
  %v432 = vsub.f32 %v176, %v304
  %v433 = vsub.f32 %v177, %v305
  %v434 = vsub.f32 %v178, %v306
  %v435 = vsub.f32 %v179, %v307
  %v436 = vsub.f32 %v180, %v308
  %v437 = vsub.f32 %v181, %v309
  %v438 = vsub.f32 %v182, %v310
  %v439 = vsub.f32 %v183, %v311
  %v440 = vsub.f32 %v184, %v312
  %v441 = vsub.f32 %v185, %v313
  %v442 = vsub.f32 %v186, %v314
  %v443 = vsub.f32 %v187, %v315
  %v444 = vsub.f32 %v188, %v316
  %v445 = vsub.f32 %v189, %v317
  %v446 = vsub.f32 %v190, %v318
  %v447 = vsub.f32 %v191, %v319
  %v448 = vsub.f32 %v192, %v320
  %v449 = vsub.f32 %v193, %v321
  %v450 = vsub.f32 %v194, %v322
  %v451 = vsub.f32 %v195, %v323
  %v452 = vsub.f32 %v196, %v324
  %v453 = vsub.f32 %v197, %v325
  %v454 = vsub.f32 %v198, %v326
  %v455 = vsub.f32 %v199, %v327
  %v456 = vsub.f32 %v200, %v328
  %v457 = vsub.f32 %v201, %v329
  %v458 = vsub.f32 %v202, %v330
  %v459 = vsub.f32 %v203, %v331
  %v460 = vsub.f32 %v204, %v332
  %v461 = vsub.f32 %v205, %v333
  %v462 = vsub.f32 %v206, %v334
  %v463 = vsub.f32 %v207, %v335
  %v464 = vmul.f32 %v336, %v336
  %v465 = vmul.f32 %v337, %v337
  %v466 = vmul.f32 %v338, %v338
  %v467 = vmul.f32 %v339, %v339
  %v468 = vmul.f32 %v340, %v340
  %v469 = vmul.f32 %v341, %v341
  %v470 = vmul.f32 %v342, %v342
  %v471 = vmul.f32 %v343, %v343
  %v472 = vmul.f32 %v344, %v344
  %v473 = vmul.f32 %v345, %v345
  %v474 = vmul.f32 %v346, %v346
  %v475 = vmul.f32 %v347, %v347
  %v476 = vmul.f32 %v348, %v348
  %v477 = vmul.f32 %v349, %v349
  %v478 = vmul.f32 %v350, %v350
  %v479 = vmul.f32 %v351, %v351
  %v480 = vmul.f32 %v352, %v352
  %v481 = vmul.f32 %v353, %v353
  %v482 = vmul.f32 %v354, %v354
  %v483 = vmul.f32 %v355, %v355
  %v484 = vmul.f32 %v356, %v356
  %v485 = vmul.f32 %v357, %v357
  %v486 = vmul.f32 %v358, %v358
  %v487 = vmul.f32 %v359, %v359
  %v488 = vmul.f32 %v360, %v360
  %v489 = vmul.f32 %v361, %v361
  %v490 = vmul.f32 %v362, %v362
  %v491 = vmul.f32 %v363, %v363
  %v492 = vmul.f32 %v364, %v364
  %v493 = vmul.f32 %v365, %v365
  %v494 = vmul.f32 %v366, %v366
  %v495 = vmul.f32 %v367, %v367
  %v496 = vmul.f32 %v368, %v368
  %v497 = vmul.f32 %v369, %v369
  %v498 = vmul.f32 %v370, %v370
  %v499 = vmul.f32 %v371, %v371
  %v500 = vmul.f32 %v372, %v372
  %v501 = vmul.f32 %v373, %v373
  %v502 = vmul.f32 %v374, %v374
  %v503 = vmul.f32 %v375, %v375
  %v504 = vmul.f32 %v376, %v376
  %v505 = vmul.f32 %v377, %v377
  %v506 = vmul.f32 %v378, %v378
  %v507 = vmul.f32 %v379, %v379
  %v508 = vmul.f32 %v380, %v380
  %v509 = vmul.f32 %v381, %v381
  %v510 = vmul.f32 %v382, %v382
  %v511 = vmul.f32 %v383, %v383
  %v512 = vmul.f32 %v384, %v384
  %v513 = vmul.f32 %v385, %v385
  %v514 = vmul.f32 %v386, %v386
  %v515 = vmul.f32 %v387, %v387
  %v516 = vmul.f32 %v388, %v388
  %v517 = vmul.f32 %v389, %v389
  %v518 = vmul.f32 %v390, %v390
  %v519 = vmul.f32 %v391, %v391
  %v520 = vmul.f32 %v392, %v392
  %v521 = vmul.f32 %v393, %v393
  %v522 = vmul.f32 %v394, %v394
  %v523 = vmul.f32 %v395, %v395
  %v524 = vmul.f32 %v396, %v396
  %v525 = vmul.f32 %v397, %v397
  %v526 = vmul.f32 %v398, %v398
  %v527 = vmul.f32 %v399, %v399
  %v528 = vmul.f32 %v400, %v400
  %v529 = vmul.f32 %v401, %v401
  %v530 = vmul.f32 %v402, %v402
  %v531 = vmul.f32 %v403, %v403
  %v532 = vmul.f32 %v404, %v404
  %v533 = vmul.f32 %v405, %v405
  %v534 = vmul.f32 %v406, %v406
  %v535 = vmul.f32 %v407, %v407
  %v536 = vmul.f32 %v408, %v408
  %v537 = vmul.f32 %v409, %v409
  %v538 = vmul.f32 %v410, %v410
  %v539 = vmul.f32 %v411, %v411
  %v540 = vmul.f32 %v412, %v412
  %v541 = vmul.f32 %v413, %v413
  %v542 = vmul.f32 %v414, %v414
  %v543 = vmul.f32 %v415, %v415
  %v544 = vmul.f32 %v416, %v416
  %v545 = vmul.f32 %v417, %v417
  %v546 = vmul.f32 %v418, %v418
  %v547 = vmul.f32 %v419, %v419
  %v548 = vmul.f32 %v420, %v420
  %v549 = vmul.f32 %v421, %v421
  %v550 = vmul.f32 %v422, %v422
  %v551 = vmul.f32 %v423, %v423
  %v552 = vmul.f32 %v424, %v424
  %v553 = vmul.f32 %v425, %v425
  %v554 = vmul.f32 %v426, %v426
  %v555 = vmul.f32 %v427, %v427
  %v556 = vmul.f32 %v428, %v428
  %v557 = vmul.f32 %v429, %v429
  %v558 = vmul.f32 %v430, %v430
  %v559 = vmul.f32 %v431, %v431
  %v560 = vmul.f32 %v432, %v432
  %v561 = vmul.f32 %v433, %v433
  %v562 = vmul.f32 %v434, %v434
  %v563 = vmul.f32 %v435, %v435
  %v564 = vmul.f32 %v436, %v436
  %v565 = vmul.f32 %v437, %v437
  %v566 = vmul.f32 %v438, %v438
  %v567 = vmul.f32 %v439, %v439
  %v568 = vmul.f32 %v440, %v440
  %v569 = vmul.f32 %v441, %v441
  %v570 = vmul.f32 %v442, %v442
  %v571 = vmul.f32 %v443, %v443
  %v572 = vmul.f32 %v444, %v444
  %v573 = vmul.f32 %v445, %v445
  %v574 = vmul.f32 %v446, %v446
  %v575 = vmul.f32 %v447, %v447
  %v576 = vmul.f32 %v448, %v448
  %v577 = vmul.f32 %v449, %v449
  %v578 = vmul.f32 %v450, %v450
  %v579 = vmul.f32 %v451, %v451
  %v580 = vmul.f32 %v452, %v452
  %v581 = vmul.f32 %v453, %v453
  %v582 = vmul.f32 %v454, %v454
  %v583 = vmul.f32 %v455, %v455
  %v584 = vmul.f32 %v456, %v456
  %v585 = vmul.f32 %v457, %v457
  %v586 = vmul.f32 %v458, %v458
  %v587 = vmul.f32 %v459, %v459
  %v588 = vmul.f32 %v460, %v460
  %v589 = vmul.f32 %v461, %v461
  %v590 = vmul.f32 %v462, %v462
  %v591 = vmul.f32 %v463, %v463
  %s592 = sadd.s32 0, 0
  %s593 = smul.u32 %s592, 1024
  %s594 = sadd.s32 %s593, 1024
  %p595 = scmp.le.s32.totalorder %s594, 1024
  // Predicated region
  $region14: #{_mse_mean_pallas.1} parent=0 // pred_check
    %p596 = pneg %p595
  $region15: #{_mse_mean_pallas.1} parent=0 // pred_check_branch
    %598 = sbr.rel (%p596) target = $region17
  $region16: #{_mse_mean_pallas.1} parent=0 // pred_region
    %v599 = vld [vmem:[%s2] sm:$0xff]
    %v600 = vadd.f32 %v464, %v465
    %v601 = vadd.f32 %v600, %v466
    %v602 = vadd.f32 %v601, %v467
    %v603 = vadd.f32 %v602, %v468
    %v604 = vadd.f32 %v603, %v469
    %v605 = vadd.f32 %v604, %v470
    %v606 = vadd.f32 %v605, %v471
    %v607 = vadd.f32 %v606, %v472
    %v608 = vadd.f32 %v607, %v473
    %v609 = vadd.f32 %v608, %v474
    %v610 = vadd.f32 %v609, %v475
    %v611 = vadd.f32 %v610, %v476
    %v612 = vadd.f32 %v611, %v477
    %v613 = vadd.f32 %v612, %v478
    %v614 = vadd.f32 %v613, %v479
    %v615 = vadd.f32 %v614, %v480
    %v616 = vadd.f32 %v615, %v481
    %v617 = vadd.f32 %v616, %v482
    %v618 = vadd.f32 %v617, %v483
    %v619 = vadd.f32 %v618, %v484
    %v620 = vadd.f32 %v619, %v485
    %v621 = vadd.f32 %v620, %v486
    %v622 = vadd.f32 %v621, %v487
    %v623 = vadd.f32 %v622, %v488
    %v624 = vadd.f32 %v623, %v489
    %v625 = vadd.f32 %v624, %v490
    %v626 = vadd.f32 %v625, %v491
    %v627 = vadd.f32 %v626, %v492
    %v628 = vadd.f32 %v627, %v493
    %v629 = vadd.f32 %v628, %v494
    %v630 = vadd.f32 %v629, %v495
    %v631 = vadd.f32 %v630, %v496
    %v632 = vadd.f32 %v631, %v497
    %v633 = vadd.f32 %v632, %v498
    %v634 = vadd.f32 %v633, %v499
    %v635 = vadd.f32 %v634, %v500
    %v636 = vadd.f32 %v635, %v501
    %v637 = vadd.f32 %v636, %v502
    %v638 = vadd.f32 %v637, %v503
    %v639 = vadd.f32 %v638, %v504
    %v640 = vadd.f32 %v639, %v505
    %v641 = vadd.f32 %v640, %v506
    %v642 = vadd.f32 %v641, %v507
    %v643 = vadd.f32 %v642, %v508
    %v644 = vadd.f32 %v643, %v509
    %v645 = vadd.f32 %v644, %v510
    %v646 = vadd.f32 %v645, %v511
    %v647 = vadd.f32 %v646, %v512
    %v648 = vadd.f32 %v647, %v513
    %v649 = vadd.f32 %v648, %v514
    %v650 = vadd.f32 %v649, %v515
    %v651 = vadd.f32 %v650, %v516
    %v652 = vadd.f32 %v651, %v517
    %v653 = vadd.f32 %v652, %v518
    %v654 = vadd.f32 %v653, %v519
    %v655 = vadd.f32 %v654, %v520
    %v656 = vadd.f32 %v655, %v521
    %v657 = vadd.f32 %v656, %v522
    %v658 = vadd.f32 %v657, %v523
    %v659 = vadd.f32 %v658, %v524
    %v660 = vadd.f32 %v659, %v525
    %v661 = vadd.f32 %v660, %v526
    %v662 = vadd.f32 %v661, %v527
    %v663 = vadd.f32 %v662, %v528
    %v664 = vadd.f32 %v663, %v529
    %v665 = vadd.f32 %v664, %v530
    %v666 = vadd.f32 %v665, %v531
    %v667 = vadd.f32 %v666, %v532
    %v668 = vadd.f32 %v667, %v533
    %v669 = vadd.f32 %v668, %v534
    %v670 = vadd.f32 %v669, %v535
    %v671 = vadd.f32 %v670, %v536
    %v672 = vadd.f32 %v671, %v537
    %v673 = vadd.f32 %v672, %v538
    %v674 = vadd.f32 %v673, %v539
    %v675 = vadd.f32 %v674, %v540
    %v676 = vadd.f32 %v675, %v541
    %v677 = vadd.f32 %v676, %v542
    %v678 = vadd.f32 %v677, %v543
    %v679 = vadd.f32 %v678, %v544
    %v680 = vadd.f32 %v679, %v545
    %v681 = vadd.f32 %v680, %v546
    %v682 = vadd.f32 %v681, %v547
    %v683 = vadd.f32 %v682, %v548
    %v684 = vadd.f32 %v683, %v549
    %v685 = vadd.f32 %v684, %v550
    %v686 = vadd.f32 %v685, %v551
    %v687 = vadd.f32 %v686, %v552
    %v688 = vadd.f32 %v687, %v553
    %v689 = vadd.f32 %v688, %v554
    %v690 = vadd.f32 %v689, %v555
    %v691 = vadd.f32 %v690, %v556
    %v692 = vadd.f32 %v691, %v557
    %v693 = vadd.f32 %v692, %v558
    %v694 = vadd.f32 %v693, %v559
    %v695 = vadd.f32 %v694, %v560
    %v696 = vadd.f32 %v695, %v561
    %v697 = vadd.f32 %v696, %v562
    %v698 = vadd.f32 %v697, %v563
    %v699 = vadd.f32 %v698, %v564
    %v700 = vadd.f32 %v699, %v565
    %v701 = vadd.f32 %v700, %v566
    %v702 = vadd.f32 %v701, %v567
    %v703 = vadd.f32 %v702, %v568
    %v704 = vadd.f32 %v703, %v569
    %v705 = vadd.f32 %v704, %v570
    %v706 = vadd.f32 %v705, %v571
    %v707 = vadd.f32 %v706, %v572
    %v708 = vadd.f32 %v707, %v573
    %v709 = vadd.f32 %v708, %v574
    %v710 = vadd.f32 %v709, %v575
    %v711 = vadd.f32 %v710, %v576
    %v712 = vadd.f32 %v711, %v577
    %v713 = vadd.f32 %v712, %v578
    %v714 = vadd.f32 %v713, %v579
    %v715 = vadd.f32 %v714, %v580
    %v716 = vadd.f32 %v715, %v581
    %v717 = vadd.f32 %v716, %v582
    %v718 = vadd.f32 %v717, %v583
    %v719 = vadd.f32 %v718, %v584
    %v720 = vadd.f32 %v719, %v585
    %v721 = vadd.f32 %v720, %v586
    %v722 = vadd.f32 %v721, %v587
    %v723 = vadd.f32 %v722, %v588
    %v724 = vadd.f32 %v723, %v589
    %v725 = vadd.f32 %v724, %v590
    %v726 = vadd.f32 %v725, %v591
    %v727 = vadd.f32 %v599, %v726
    %728 = vst [vmem:[%s2] sm:$0xff] %v727
  $region17: #{_mse_mean_pallas.1} parent=0 // pred_fallthru
    _
  %p729 = scmp.gt.s32.totalorder %s594, 1024
  // Predicated region
  $region18: #{_mse_mean_pallas.1} parent=0 // pred_check
    %p730 = pneg %p729
  $region19: #{_mse_mean_pallas.1} parent=0 // pred_check_branch
    %732 = sbr.rel (%p730) target = $region21
  $region20: #{_mse_mean_pallas.1} parent=0 // pred_region
    %v733 = vlaneseq
    %v734 = vshrl.u32 %v733, 7
    %v735 = vadd.s32 %v734, 8
    %v736 = vadd.s32 %v734, 16
    %v737 = vadd.s32 %v734, 24
    %v738 = vadd.s32 %v734, 32
    %v739 = vadd.s32 %v734, 40
    %v740 = vadd.s32 %v734, 48
    %v741 = vadd.s32 %v734, 56
    %v742 = vadd.s32 %v734, 64
    %v743 = vadd.s32 %v734, 72
    %v744 = vadd.s32 %v734, 80
    %v745 = vadd.s32 %v734, 88
    %v746 = vadd.s32 %v734, 96
    %v747 = vadd.s32 %v734, 104
    %v748 = vadd.s32 %v734, 112
    %v749 = vadd.s32 %v734, 120
    %v750 = vadd.s32 %v734, 128
    %v751 = vadd.s32 %v734, 136
    %v752 = vadd.s32 %v734, 144
    %v753 = vadd.s32 %v734, 152
    %v754 = vadd.s32 %v734, 160
    %v755 = vadd.s32 %v734, 168
    %v756 = vadd.s32 %v734, 176
    %v757 = vadd.s32 %v734, 184
    %v758 = vadd.s32 %v734, 192
    %v759 = vadd.s32 %v734, 200
    %v760 = vadd.s32 %v734, 208
    %v761 = vadd.s32 %v734, 216
    %v762 = vadd.s32 %v734, 224
    %v763 = vadd.s32 %v734, 232
    %v764 = vadd.s32 %v734, 240
    %v765 = vadd.s32 %v734, 248
    %v766 = vadd.s32 %v734, 256
    %v767 = vadd.s32 %v734, 264
    %v768 = vadd.s32 %v734, 272
    %v769 = vadd.s32 %v734, 280
    %v770 = vadd.s32 %v734, 288
    %v771 = vadd.s32 %v734, 296
    %v772 = vadd.s32 %v734, 304
    %v773 = vadd.s32 %v734, 312
    %v774 = vadd.s32 %v734, 320
    %v775 = vadd.s32 %v734, 328
    %v776 = vadd.s32 %v734, 336
    %v777 = vadd.s32 %v734, 344
    %v778 = vadd.s32 %v734, 352
    %v779 = vadd.s32 %v734, 360
    %v780 = vadd.s32 %v734, 368
    %v781 = vadd.s32 %v734, 376
    %v782 = vadd.s32 %v734, 384
    %v783 = vadd.s32 %v734, 392
    %v784 = vadd.s32 %v734, 400
    %v785 = vadd.s32 %v734, 408
    %v786 = vadd.s32 %v734, 416
    %v787 = vadd.s32 %v734, 424
    %v788 = vadd.s32 %v734, 432
    %v789 = vadd.s32 %v734, 440
    %v790 = vadd.s32 %v734, 448
    %v791 = vadd.s32 %v734, 456
    %v792 = vadd.s32 %v734, 464
    %v793 = vadd.s32 %v734, 472
    %v794 = vadd.s32 %v734, 480
    %v795 = vadd.s32 %v734, 488
    %v796 = vadd.s32 %v734, 496
    %v797 = vadd.s32 %v734, 504
    %v798 = vadd.s32 %v734, 512
    %v799 = vadd.s32 %v734, 520
    %v800 = vadd.s32 %v734, 528
    %v801 = vadd.s32 %v734, 536
    %v802 = vadd.s32 %v734, 544
    %v803 = vadd.s32 %v734, 552
    %v804 = vadd.s32 %v734, 560
    %v805 = vadd.s32 %v734, 568
    %v806 = vadd.s32 %v734, 576
    %v807 = vadd.s32 %v734, 584
    %v808 = vadd.s32 %v734, 592
    %v809 = vadd.s32 %v734, 600
    %v810 = vadd.s32 %v734, 608
    %v811 = vadd.s32 %v734, 616
    %v812 = vadd.s32 %v734, 624
    %v813 = vadd.s32 %v734, 632
    %v814 = vadd.s32 %v734, 640
    %v815 = vadd.s32 %v734, 648
    %v816 = vadd.s32 %v734, 656
    %v817 = vadd.s32 %v734, 664
    %v818 = vadd.s32 %v734, 672
    %v819 = vadd.s32 %v734, 680
    %v820 = vadd.s32 %v734, 688
    %v821 = vadd.s32 %v734, 696
    %v822 = vadd.s32 %v734, 704
    %v823 = vadd.s32 %v734, 712
    %v824 = vadd.s32 %v734, 720
    %v825 = vadd.s32 %v734, 728
    %v826 = vadd.s32 %v734, 736
    %v827 = vadd.s32 %v734, 744
    %v828 = vadd.s32 %v734, 752
    %v829 = vadd.s32 %v734, 760
    %v830 = vadd.s32 %v734, 768
    %v831 = vadd.s32 %v734, 776
    %v832 = vadd.s32 %v734, 784
    %v833 = vadd.s32 %v734, 792
    %v834 = vadd.s32 %v734, 800
    %v835 = vadd.s32 %v734, 808
    %v836 = vadd.s32 %v734, 816
    %v837 = vadd.s32 %v734, 824
    %v838 = vadd.s32 %v734, 832
    %v839 = vadd.s32 %v734, 840
    %v840 = vadd.s32 %v734, 848
    %v841 = vadd.s32 %v734, 856
    %v842 = vadd.s32 %v734, 864
    %v843 = vadd.s32 %v734, 872
    %v844 = vadd.s32 %v734, 880
    %v845 = vadd.s32 %v734, 888
    %v846 = vadd.s32 %v734, 896
    %v847 = vadd.s32 %v734, 904
    %v848 = vadd.s32 %v734, 912
    %v849 = vadd.s32 %v734, 920
    %v850 = vadd.s32 %v734, 928
    %v851 = vadd.s32 %v734, 936
    %v852 = vadd.s32 %v734, 944
    %v853 = vadd.s32 %v734, 952
    %v854 = vadd.s32 %v734, 960
    %v855 = vadd.s32 %v734, 968
    %v856 = vadd.s32 %v734, 976
    %v857 = vadd.s32 %v734, 984
    %v858 = vadd.s32 %v734, 992
    %v859 = vadd.s32 %v734, 1000
    %v860 = vadd.s32 %v734, 1008
    %v861 = vadd.s32 %v734, 1016
    %v862 = vstv %s593
    %v863 = vadd.s32 %v734, %v862
    %v864 = vadd.s32 %v735, %v862
    %v865 = vadd.s32 %v736, %v862
    %v866 = vadd.s32 %v737, %v862
    %v867 = vadd.s32 %v738, %v862
    %v868 = vadd.s32 %v739, %v862
    %v869 = vadd.s32 %v740, %v862
    %v870 = vadd.s32 %v741, %v862
    %v871 = vadd.s32 %v742, %v862
    %v872 = vadd.s32 %v743, %v862
    %v873 = vadd.s32 %v744, %v862
    %v874 = vadd.s32 %v745, %v862
    %v875 = vadd.s32 %v746, %v862
    %v876 = vadd.s32 %v747, %v862
    %v877 = vadd.s32 %v748, %v862
    %v878 = vadd.s32 %v749, %v862
    %v879 = vadd.s32 %v750, %v862
    %v880 = vadd.s32 %v751, %v862
    %v881 = vadd.s32 %v752, %v862
    %v882 = vadd.s32 %v753, %v862
    %v883 = vadd.s32 %v754, %v862
    %v884 = vadd.s32 %v755, %v862
    %v885 = vadd.s32 %v756, %v862
    %v886 = vadd.s32 %v757, %v862
    %v887 = vadd.s32 %v758, %v862
    %v888 = vadd.s32 %v759, %v862
    %v889 = vadd.s32 %v760, %v862
    %v890 = vadd.s32 %v761, %v862
    %v891 = vadd.s32 %v762, %v862
    %v892 = vadd.s32 %v763, %v862
    %v893 = vadd.s32 %v764, %v862
    %v894 = vadd.s32 %v765, %v862
    %v895 = vadd.s32 %v766, %v862
    %v896 = vadd.s32 %v767, %v862
    %v897 = vadd.s32 %v768, %v862
    %v898 = vadd.s32 %v769, %v862
    %v899 = vadd.s32 %v770, %v862
    %v900 = vadd.s32 %v771, %v862
    %v901 = vadd.s32 %v772, %v862
    %v902 = vadd.s32 %v773, %v862
    %v903 = vadd.s32 %v774, %v862
    %v904 = vadd.s32 %v775, %v862
    %v905 = vadd.s32 %v776, %v862
    %v906 = vadd.s32 %v777, %v862
    %v907 = vadd.s32 %v778, %v862
    %v908 = vadd.s32 %v779, %v862
    %v909 = vadd.s32 %v780, %v862
    %v910 = vadd.s32 %v781, %v862
    %v911 = vadd.s32 %v782, %v862
    %v912 = vadd.s32 %v783, %v862
    %v913 = vadd.s32 %v784, %v862
    %v914 = vadd.s32 %v785, %v862
    %v915 = vadd.s32 %v786, %v862
    %v916 = vadd.s32 %v787, %v862
    %v917 = vadd.s32 %v788, %v862
    %v918 = vadd.s32 %v789, %v862
    %v919 = vadd.s32 %v790, %v862
    %v920 = vadd.s32 %v791, %v862
    %v921 = vadd.s32 %v792, %v862
    %v922 = vadd.s32 %v793, %v862
    %v923 = vadd.s32 %v794, %v862
    %v924 = vadd.s32 %v795, %v862
    %v925 = vadd.s32 %v796, %v862
    %v926 = vadd.s32 %v797, %v862
    %v927 = vadd.s32 %v798, %v862
    %v928 = vadd.s32 %v799, %v862
    %v929 = vadd.s32 %v800, %v862
    %v930 = vadd.s32 %v801, %v862
    %v931 = vadd.s32 %v802, %v862
    %v932 = vadd.s32 %v803, %v862
    %v933 = vadd.s32 %v804, %v862
    %v934 = vadd.s32 %v805, %v862
    %v935 = vadd.s32 %v806, %v862
    %v936 = vadd.s32 %v807, %v862
    %v937 = vadd.s32 %v808, %v862
    %v938 = vadd.s32 %v809, %v862
    %v939 = vadd.s32 %v810, %v862
    %v940 = vadd.s32 %v811, %v862
    %v941 = vadd.s32 %v812, %v862
    %v942 = vadd.s32 %v813, %v862
    %v943 = vadd.s32 %v814, %v862
    %v944 = vadd.s32 %v815, %v862
    %v945 = vadd.s32 %v816, %v862
    %v946 = vadd.s32 %v817, %v862
    %v947 = vadd.s32 %v818, %v862
    %v948 = vadd.s32 %v819, %v862
    %v949 = vadd.s32 %v820, %v862
    %v950 = vadd.s32 %v821, %v862
    %v951 = vadd.s32 %v822, %v862
    %v952 = vadd.s32 %v823, %v862
    %v953 = vadd.s32 %v824, %v862
    %v954 = vadd.s32 %v825, %v862
    %v955 = vadd.s32 %v826, %v862
    %v956 = vadd.s32 %v827, %v862
    %v957 = vadd.s32 %v828, %v862
    %v958 = vadd.s32 %v829, %v862
    %v959 = vadd.s32 %v830, %v862
    %v960 = vadd.s32 %v831, %v862
    %v961 = vadd.s32 %v832, %v862
    %v962 = vadd.s32 %v833, %v862
    %v963 = vadd.s32 %v834, %v862
    %v964 = vadd.s32 %v835, %v862
    %v965 = vadd.s32 %v836, %v862
    %v966 = vadd.s32 %v837, %v862
    %v967 = vadd.s32 %v838, %v862
    %v968 = vadd.s32 %v839, %v862
    %v969 = vadd.s32 %v840, %v862
    %v970 = vadd.s32 %v841, %v862
    %v971 = vadd.s32 %v842, %v862
    %v972 = vadd.s32 %v843, %v862
    %v973 = vadd.s32 %v844, %v862
    %v974 = vadd.s32 %v845, %v862
    %v975 = vadd.s32 %v846, %v862
    %v976 = vadd.s32 %v847, %v862
    %v977 = vadd.s32 %v848, %v862
    %v978 = vadd.s32 %v849, %v862
    %v979 = vadd.s32 %v850, %v862
    %v980 = vadd.s32 %v851, %v862
    %v981 = vadd.s32 %v852, %v862
    %v982 = vadd.s32 %v853, %v862
    %v983 = vadd.s32 %v854, %v862
    %v984 = vadd.s32 %v855, %v862
    %v985 = vadd.s32 %v856, %v862
    %v986 = vadd.s32 %v857, %v862
    %v987 = vadd.s32 %v858, %v862
    %v988 = vadd.s32 %v859, %v862
    %v989 = vadd.s32 %v860, %v862
    %v990 = vadd.s32 %v861, %v862
    %vm991 = vcmp.lt.s32.totalorder %v863, 1024
    %vm992 = vcmp.lt.s32.totalorder %v864, 1024
    %vm993 = vcmp.lt.s32.totalorder %v865, 1024
    %vm994 = vcmp.lt.s32.totalorder %v866, 1024
    %vm995 = vcmp.lt.s32.totalorder %v867, 1024
    %vm996 = vcmp.lt.s32.totalorder %v868, 1024
    %vm997 = vcmp.lt.s32.totalorder %v869, 1024
    %vm998 = vcmp.lt.s32.totalorder %v870, 1024
    %vm999 = vcmp.lt.s32.totalorder %v871, 1024
    %vm1000 = vcmp.lt.s32.totalorder %v872, 1024
    %vm1001 = vcmp.lt.s32.totalorder %v873, 1024
    %vm1002 = vcmp.lt.s32.totalorder %v874, 1024
    %vm1003 = vcmp.lt.s32.totalorder %v875, 1024
    %vm1004 = vcmp.lt.s32.totalorder %v876, 1024
    %vm1005 = vcmp.lt.s32.totalorder %v877, 1024
    %vm1006 = vcmp.lt.s32.totalorder %v878, 1024
    %vm1007 = vcmp.lt.s32.totalorder %v879, 1024
    %vm1008 = vcmp.lt.s32.totalorder %v880, 1024
    %vm1009 = vcmp.lt.s32.totalorder %v881, 1024
    %vm1010 = vcmp.lt.s32.totalorder %v882, 1024
    %vm1011 = vcmp.lt.s32.totalorder %v883, 1024
    %vm1012 = vcmp.lt.s32.totalorder %v884, 1024
    %vm1013 = vcmp.lt.s32.totalorder %v885, 1024
    %vm1014 = vcmp.lt.s32.totalorder %v886, 1024
    %vm1015 = vcmp.lt.s32.totalorder %v887, 1024
    %vm1016 = vcmp.lt.s32.totalorder %v888, 1024
    %vm1017 = vcmp.lt.s32.totalorder %v889, 1024
    %vm1018 = vcmp.lt.s32.totalorder %v890, 1024
    %vm1019 = vcmp.lt.s32.totalorder %v891, 1024
    %vm1020 = vcmp.lt.s32.totalorder %v892, 1024
    %vm1021 = vcmp.lt.s32.totalorder %v893, 1024
    %vm1022 = vcmp.lt.s32.totalorder %v894, 1024
    %vm1023 = vcmp.lt.s32.totalorder %v895, 1024
    %vm1024 = vcmp.lt.s32.totalorder %v896, 1024
    %vm1025 = vcmp.lt.s32.totalorder %v897, 1024
    %vm1026 = vcmp.lt.s32.totalorder %v898, 1024
    %vm1027 = vcmp.lt.s32.totalorder %v899, 1024
    %vm1028 = vcmp.lt.s32.totalorder %v900, 1024
    %vm1029 = vcmp.lt.s32.totalorder %v901, 1024
    %vm1030 = vcmp.lt.s32.totalorder %v902, 1024
    %vm1031 = vcmp.lt.s32.totalorder %v903, 1024
    %vm1032 = vcmp.lt.s32.totalorder %v904, 1024
    %vm1033 = vcmp.lt.s32.totalorder %v905, 1024
    %vm1034 = vcmp.lt.s32.totalorder %v906, 1024
    %vm1035 = vcmp.lt.s32.totalorder %v907, 1024
    %vm1036 = vcmp.lt.s32.totalorder %v908, 1024
    %vm1037 = vcmp.lt.s32.totalorder %v909, 1024
    %vm1038 = vcmp.lt.s32.totalorder %v910, 1024
    %vm1039 = vcmp.lt.s32.totalorder %v911, 1024
    %vm1040 = vcmp.lt.s32.totalorder %v912, 1024
    %vm1041 = vcmp.lt.s32.totalorder %v913, 1024
    %vm1042 = vcmp.lt.s32.totalorder %v914, 1024
    %vm1043 = vcmp.lt.s32.totalorder %v915, 1024
    %vm1044 = vcmp.lt.s32.totalorder %v916, 1024
    %vm1045 = vcmp.lt.s32.totalorder %v917, 1024
    %vm1046 = vcmp.lt.s32.totalorder %v918, 1024
    %vm1047 = vcmp.lt.s32.totalorder %v919, 1024
    %vm1048 = vcmp.lt.s32.totalorder %v920, 1024
    %vm1049 = vcmp.lt.s32.totalorder %v921, 1024
    %vm1050 = vcmp.lt.s32.totalorder %v922, 1024
    %vm1051 = vcmp.lt.s32.totalorder %v923, 1024
    %vm1052 = vcmp.lt.s32.totalorder %v924, 1024
    %vm1053 = vcmp.lt.s32.totalorder %v925, 1024
    %vm1054 = vcmp.lt.s32.totalorder %v926, 1024
    %vm1055 = vcmp.lt.s32.totalorder %v927, 1024
    %vm1056 = vcmp.lt.s32.totalorder %v928, 1024
    %vm1057 = vcmp.lt.s32.totalorder %v929, 1024
    %vm1058 = vcmp.lt.s32.totalorder %v930, 1024
    %vm1059 = vcmp.lt.s32.totalorder %v931, 1024
    %vm1060 = vcmp.lt.s32.totalorder %v932, 1024
    %vm1061 = vcmp.lt.s32.totalorder %v933, 1024
    %vm1062 = vcmp.lt.s32.totalorder %v934, 1024
    %vm1063 = vcmp.lt.s32.totalorder %v935, 1024
    %vm1064 = vcmp.lt.s32.totalorder %v936, 1024
    %vm1065 = vcmp.lt.s32.totalorder %v937, 1024
    %vm1066 = vcmp.lt.s32.totalorder %v938, 1024
    %vm1067 = vcmp.lt.s32.totalorder %v939, 1024
    %vm1068 = vcmp.lt.s32.totalorder %v940, 1024
    %vm1069 = vcmp.lt.s32.totalorder %v941, 1024
    %vm1070 = vcmp.lt.s32.totalorder %v942, 1024
    %vm1071 = vcmp.lt.s32.totalorder %v943, 1024
    %vm1072 = vcmp.lt.s32.totalorder %v944, 1024
    %vm1073 = vcmp.lt.s32.totalorder %v945, 1024
    %vm1074 = vcmp.lt.s32.totalorder %v946, 1024
    %vm1075 = vcmp.lt.s32.totalorder %v947, 1024
    %vm1076 = vcmp.lt.s32.totalorder %v948, 1024
    %vm1077 = vcmp.lt.s32.totalorder %v949, 1024
    %vm1078 = vcmp.lt.s32.totalorder %v950, 1024
    %vm1079 = vcmp.lt.s32.totalorder %v951, 1024
    %vm1080 = vcmp.lt.s32.totalorder %v952, 1024
    %vm1081 = vcmp.lt.s32.totalorder %v953, 1024
    %vm1082 = vcmp.lt.s32.totalorder %v954, 1024
    %vm1083 = vcmp.lt.s32.totalorder %v955, 1024
    %vm1084 = vcmp.lt.s32.totalorder %v956, 1024
    %vm1085 = vcmp.lt.s32.totalorder %v957, 1024
    %vm1086 = vcmp.lt.s32.totalorder %v958, 1024
    %vm1087 = vcmp.lt.s32.totalorder %v959, 1024
    %vm1088 = vcmp.lt.s32.totalorder %v960, 1024
    %vm1089 = vcmp.lt.s32.totalorder %v961, 1024
    %vm1090 = vcmp.lt.s32.totalorder %v962, 1024
    %vm1091 = vcmp.lt.s32.totalorder %v963, 1024
    %vm1092 = vcmp.lt.s32.totalorder %v964, 1024
    %vm1093 = vcmp.lt.s32.totalorder %v965, 1024
    %vm1094 = vcmp.lt.s32.totalorder %v966, 1024
    %vm1095 = vcmp.lt.s32.totalorder %v967, 1024
    %vm1096 = vcmp.lt.s32.totalorder %v968, 1024
    %vm1097 = vcmp.lt.s32.totalorder %v969, 1024
    %vm1098 = vcmp.lt.s32.totalorder %v970, 1024
    %vm1099 = vcmp.lt.s32.totalorder %v971, 1024
    %vm1100 = vcmp.lt.s32.totalorder %v972, 1024
    %vm1101 = vcmp.lt.s32.totalorder %v973, 1024
    %vm1102 = vcmp.lt.s32.totalorder %v974, 1024
    %vm1103 = vcmp.lt.s32.totalorder %v975, 1024
    %vm1104 = vcmp.lt.s32.totalorder %v976, 1024
    %vm1105 = vcmp.lt.s32.totalorder %v977, 1024
    %vm1106 = vcmp.lt.s32.totalorder %v978, 1024
    %vm1107 = vcmp.lt.s32.totalorder %v979, 1024
    %vm1108 = vcmp.lt.s32.totalorder %v980, 1024
    %vm1109 = vcmp.lt.s32.totalorder %v981, 1024
    %vm1110 = vcmp.lt.s32.totalorder %v982, 1024
    %vm1111 = vcmp.lt.s32.totalorder %v983, 1024
    %vm1112 = vcmp.lt.s32.totalorder %v984, 1024
    %vm1113 = vcmp.lt.s32.totalorder %v985, 1024
    %vm1114 = vcmp.lt.s32.totalorder %v986, 1024
    %vm1115 = vcmp.lt.s32.totalorder %v987, 1024
    %vm1116 = vcmp.lt.s32.totalorder %v988, 1024
    %vm1117 = vcmp.lt.s32.totalorder %v989, 1024
    %vm1118 = vcmp.lt.s32.totalorder %v990, 1024
    %v1119 = vsel %vm991, %v464, 0.0
    %v1120 = vsel %vm992, %v465, 0.0
    %v1121 = vsel %vm993, %v466, 0.0
    %v1122 = vsel %vm994, %v467, 0.0
    %v1123 = vsel %vm995, %v468, 0.0
    %v1124 = vsel %vm996, %v469, 0.0
    %v1125 = vsel %vm997, %v470, 0.0
    %v1126 = vsel %vm998, %v471, 0.0
    %v1127 = vsel %vm999, %v472, 0.0
    %v1128 = vsel %vm1000, %v473, 0.0
    %v1129 = vsel %vm1001, %v474, 0.0
    %v1130 = vsel %vm1002, %v475, 0.0
    %v1131 = vsel %vm1003, %v476, 0.0
    %v1132 = vsel %vm1004, %v477, 0.0
    %v1133 = vsel %vm1005, %v478, 0.0
    %v1134 = vsel %vm1006, %v479, 0.0
    %v1135 = vsel %vm1007, %v480, 0.0
    %v1136 = vsel %vm1008, %v481, 0.0
    %v1137 = vsel %vm1009, %v482, 0.0
    %v1138 = vsel %vm1010, %v483, 0.0
    %v1139 = vsel %vm1011, %v484, 0.0
    %v1140 = vsel %vm1012, %v485, 0.0
    %v1141 = vsel %vm1013, %v486, 0.0
    %v1142 = vsel %vm1014, %v487, 0.0
    %v1143 = vsel %vm1015, %v488, 0.0
    %v1144 = vsel %vm1016, %v489, 0.0
    %v1145 = vsel %vm1017, %v490, 0.0
    %v1146 = vsel %vm1018, %v491, 0.0
    %v1147 = vsel %vm1019, %v492, 0.0
    %v1148 = vsel %vm1020, %v493, 0.0
    %v1149 = vsel %vm1021, %v494, 0.0
    %v1150 = vsel %vm1022, %v495, 0.0
    %v1151 = vsel %vm1023, %v496, 0.0
    %v1152 = vsel %vm1024, %v497, 0.0
    %v1153 = vsel %vm1025, %v498, 0.0
    %v1154 = vsel %vm1026, %v499, 0.0
    %v1155 = vsel %vm1027, %v500, 0.0
    %v1156 = vsel %vm1028, %v501, 0.0
    %v1157 = vsel %vm1029, %v502, 0.0
    %v1158 = vsel %vm1030, %v503, 0.0
    %v1159 = vsel %vm1031, %v504, 0.0
    %v1160 = vsel %vm1032, %v505, 0.0
    %v1161 = vsel %vm1033, %v506, 0.0
    %v1162 = vsel %vm1034, %v507, 0.0
    %v1163 = vsel %vm1035, %v508, 0.0
    %v1164 = vsel %vm1036, %v509, 0.0
    %v1165 = vsel %vm1037, %v510, 0.0
    %v1166 = vsel %vm1038, %v511, 0.0
    %v1167 = vsel %vm1039, %v512, 0.0
    %v1168 = vsel %vm1040, %v513, 0.0
    %v1169 = vsel %vm1041, %v514, 0.0
    %v1170 = vsel %vm1042, %v515, 0.0
    %v1171 = vsel %vm1043, %v516, 0.0
    %v1172 = vsel %vm1044, %v517, 0.0
    %v1173 = vsel %vm1045, %v518, 0.0
    %v1174 = vsel %vm1046, %v519, 0.0
    %v1175 = vsel %vm1047, %v520, 0.0
    %v1176 = vsel %vm1048, %v521, 0.0
    %v1177 = vsel %vm1049, %v522, 0.0
    %v1178 = vsel %vm1050, %v523, 0.0
    %v1179 = vsel %vm1051, %v524, 0.0
    %v1180 = vsel %vm1052, %v525, 0.0
    %v1181 = vsel %vm1053, %v526, 0.0
    %v1182 = vsel %vm1054, %v527, 0.0
    %v1183 = vsel %vm1055, %v528, 0.0
    %v1184 = vsel %vm1056, %v529, 0.0
    %v1185 = vsel %vm1057, %v530, 0.0
    %v1186 = vsel %vm1058, %v531, 0.0
    %v1187 = vsel %vm1059, %v532, 0.0
    %v1188 = vsel %vm1060, %v533, 0.0
    %v1189 = vsel %vm1061, %v534, 0.0
    %v1190 = vsel %vm1062, %v535, 0.0
    %v1191 = vsel %vm1063, %v536, 0.0
    %v1192 = vsel %vm1064, %v537, 0.0
    %v1193 = vsel %vm1065, %v538, 0.0
    %v1194 = vsel %vm1066, %v539, 0.0
    %v1195 = vsel %vm1067, %v540, 0.0
    %v1196 = vsel %vm1068, %v541, 0.0
    %v1197 = vsel %vm1069, %v542, 0.0
    %v1198 = vsel %vm1070, %v543, 0.0
    %v1199 = vsel %vm1071, %v544, 0.0
    %v1200 = vsel %vm1072, %v545, 0.0
    %v1201 = vsel %vm1073, %v546, 0.0
    %v1202 = vsel %vm1074, %v547, 0.0
    %v1203 = vsel %vm1075, %v548, 0.0
    %v1204 = vsel %vm1076, %v549, 0.0
    %v1205 = vsel %vm1077, %v550, 0.0
    %v1206 = vsel %vm1078, %v551, 0.0
    %v1207 = vsel %vm1079, %v552, 0.0
    %v1208 = vsel %vm1080, %v553, 0.0
    %v1209 = vsel %vm1081, %v554, 0.0
    %v1210 = vsel %vm1082, %v555, 0.0
    %v1211 = vsel %vm1083, %v556, 0.0
    %v1212 = vsel %vm1084, %v557, 0.0
    %v1213 = vsel %vm1085, %v558, 0.0
    %v1214 = vsel %vm1086, %v559, 0.0
    %v1215 = vsel %vm1087, %v560, 0.0
    %v1216 = vsel %vm1088, %v561, 0.0
    %v1217 = vsel %vm1089, %v562, 0.0
    %v1218 = vsel %vm1090, %v563, 0.0
    %v1219 = vsel %vm1091, %v564, 0.0
    %v1220 = vsel %vm1092, %v565, 0.0
    %v1221 = vsel %vm1093, %v566, 0.0
    %v1222 = vsel %vm1094, %v567, 0.0
    %v1223 = vsel %vm1095, %v568, 0.0
    %v1224 = vsel %vm1096, %v569, 0.0
    %v1225 = vsel %vm1097, %v570, 0.0
    %v1226 = vsel %vm1098, %v571, 0.0
    %v1227 = vsel %vm1099, %v572, 0.0
    %v1228 = vsel %vm1100, %v573, 0.0
    %v1229 = vsel %vm1101, %v574, 0.0
    %v1230 = vsel %vm1102, %v575, 0.0
    %v1231 = vsel %vm1103, %v576, 0.0
    %v1232 = vsel %vm1104, %v577, 0.0
    %v1233 = vsel %vm1105, %v578, 0.0
    %v1234 = vsel %vm1106, %v579, 0.0
    %v1235 = vsel %vm1107, %v580, 0.0
    %v1236 = vsel %vm1108, %v581, 0.0
    %v1237 = vsel %vm1109, %v582, 0.0
    %v1238 = vsel %vm1110, %v583, 0.0
    %v1239 = vsel %vm1111, %v584, 0.0
    %v1240 = vsel %vm1112, %v585, 0.0
    %v1241 = vsel %vm1113, %v586, 0.0
    %v1242 = vsel %vm1114, %v587, 0.0
    %v1243 = vsel %vm1115, %v588, 0.0
    %v1244 = vsel %vm1116, %v589, 0.0
    %v1245 = vsel %vm1117, %v590, 0.0
    %v1246 = vsel %vm1118, %v591, 0.0
    %v1247 = vld [vmem:[%s2] sm:$0xff]
    %v1248 = vadd.f32 %v1119, %v1120
    %v1249 = vadd.f32 %v1248, %v1121
    %v1250 = vadd.f32 %v1249, %v1122
    %v1251 = vadd.f32 %v1250, %v1123
    %v1252 = vadd.f32 %v1251, %v1124
    %v1253 = vadd.f32 %v1252, %v1125
    %v1254 = vadd.f32 %v1253, %v1126
    %v1255 = vadd.f32 %v1254, %v1127
    %v1256 = vadd.f32 %v1255, %v1128
    %v1257 = vadd.f32 %v1256, %v1129
    %v1258 = vadd.f32 %v1257, %v1130
    %v1259 = vadd.f32 %v1258, %v1131
    %v1260 = vadd.f32 %v1259, %v1132
    %v1261 = vadd.f32 %v1260, %v1133
    %v1262 = vadd.f32 %v1261, %v1134
    %v1263 = vadd.f32 %v1262, %v1135
    %v1264 = vadd.f32 %v1263, %v1136
    %v1265 = vadd.f32 %v1264, %v1137
    %v1266 = vadd.f32 %v1265, %v1138
    %v1267 = vadd.f32 %v1266, %v1139
    %v1268 = vadd.f32 %v1267, %v1140
    %v1269 = vadd.f32 %v1268, %v1141
    %v1270 = vadd.f32 %v1269, %v1142
    %v1271 = vadd.f32 %v1270, %v1143
    %v1272 = vadd.f32 %v1271, %v1144
    %v1273 = vadd.f32 %v1272, %v1145
    %v1274 = vadd.f32 %v1273, %v1146
    %v1275 = vadd.f32 %v1274, %v1147
    %v1276 = vadd.f32 %v1275, %v1148
    %v1277 = vadd.f32 %v1276, %v1149
    %v1278 = vadd.f32 %v1277, %v1150
    %v1279 = vadd.f32 %v1278, %v1151
    %v1280 = vadd.f32 %v1279, %v1152
    %v1281 = vadd.f32 %v1280, %v1153
    %v1282 = vadd.f32 %v1281, %v1154
    %v1283 = vadd.f32 %v1282, %v1155
    %v1284 = vadd.f32 %v1283, %v1156
    %v1285 = vadd.f32 %v1284, %v1157
    %v1286 = vadd.f32 %v1285, %v1158
    %v1287 = vadd.f32 %v1286, %v1159
    %v1288 = vadd.f32 %v1287, %v1160
    %v1289 = vadd.f32 %v1288, %v1161
    %v1290 = vadd.f32 %v1289, %v1162
    %v1291 = vadd.f32 %v1290, %v1163
    %v1292 = vadd.f32 %v1291, %v1164
    %v1293 = vadd.f32 %v1292, %v1165
    %v1294 = vadd.f32 %v1293, %v1166
    %v1295 = vadd.f32 %v1294, %v1167
    %v1296 = vadd.f32 %v1295, %v1168
    %v1297 = vadd.f32 %v1296, %v1169
    %v1298 = vadd.f32 %v1297, %v1170
    %v1299 = vadd.f32 %v1298, %v1171
    %v1300 = vadd.f32 %v1299, %v1172
    %v1301 = vadd.f32 %v1300, %v1173
    %v1302 = vadd.f32 %v1301, %v1174
    %v1303 = vadd.f32 %v1302, %v1175
    %v1304 = vadd.f32 %v1303, %v1176
    %v1305 = vadd.f32 %v1304, %v1177
    %v1306 = vadd.f32 %v1305, %v1178
    %v1307 = vadd.f32 %v1306, %v1179
    %v1308 = vadd.f32 %v1307, %v1180
    %v1309 = vadd.f32 %v1308, %v1181
    %v1310 = vadd.f32 %v1309, %v1182
    %v1311 = vadd.f32 %v1310, %v1183
    %v1312 = vadd.f32 %v1311, %v1184
    %v1313 = vadd.f32 %v1312, %v1185
    %v1314 = vadd.f32 %v1313, %v1186
    %v1315 = vadd.f32 %v1314, %v1187
    %v1316 = vadd.f32 %v1315, %v1188
    %v1317 = vadd.f32 %v1316, %v1189
    %v1318 = vadd.f32 %v1317, %v1190
    %v1319 = vadd.f32 %v1318, %v1191
    %v1320 = vadd.f32 %v1319, %v1192
    %v1321 = vadd.f32 %v1320, %v1193
    %v1322 = vadd.f32 %v1321, %v1194
    %v1323 = vadd.f32 %v1322, %v1195
    %v1324 = vadd.f32 %v1323, %v1196
    %v1325 = vadd.f32 %v1324, %v1197
    %v1326 = vadd.f32 %v1325, %v1198
    %v1327 = vadd.f32 %v1326, %v1199
    %v1328 = vadd.f32 %v1327, %v1200
    %v1329 = vadd.f32 %v1328, %v1201
    %v1330 = vadd.f32 %v1329, %v1202
    %v1331 = vadd.f32 %v1330, %v1203
    %v1332 = vadd.f32 %v1331, %v1204
    %v1333 = vadd.f32 %v1332, %v1205
    %v1334 = vadd.f32 %v1333, %v1206
    %v1335 = vadd.f32 %v1334, %v1207
    %v1336 = vadd.f32 %v1335, %v1208
    %v1337 = vadd.f32 %v1336, %v1209
    %v1338 = vadd.f32 %v1337, %v1210
    %v1339 = vadd.f32 %v1338, %v1211
    %v1340 = vadd.f32 %v1339, %v1212
    %v1341 = vadd.f32 %v1340, %v1213
    %v1342 = vadd.f32 %v1341, %v1214
    %v1343 = vadd.f32 %v1342, %v1215
    %v1344 = vadd.f32 %v1343, %v1216
    %v1345 = vadd.f32 %v1344, %v1217
    %v1346 = vadd.f32 %v1345, %v1218
    %v1347 = vadd.f32 %v1346, %v1219
    %v1348 = vadd.f32 %v1347, %v1220
    %v1349 = vadd.f32 %v1348, %v1221
    %v1350 = vadd.f32 %v1349, %v1222
    %v1351 = vadd.f32 %v1350, %v1223
    %v1352 = vadd.f32 %v1351, %v1224
    %v1353 = vadd.f32 %v1352, %v1225
    %v1354 = vadd.f32 %v1353, %v1226
    %v1355 = vadd.f32 %v1354, %v1227
    %v1356 = vadd.f32 %v1355, %v1228
    %v1357 = vadd.f32 %v1356, %v1229
    %v1358 = vadd.f32 %v1357, %v1230
    %v1359 = vadd.f32 %v1358, %v1231
    %v1360 = vadd.f32 %v1359, %v1232
    %v1361 = vadd.f32 %v1360, %v1233
    %v1362 = vadd.f32 %v1361, %v1234
    %v1363 = vadd.f32 %v1362, %v1235
    %v1364 = vadd.f32 %v1363, %v1236
    %v1365 = vadd.f32 %v1364, %v1237
    %v1366 = vadd.f32 %v1365, %v1238
    %v1367 = vadd.f32 %v1366, %v1239
    %v1368 = vadd.f32 %v1367, %v1240
    %v1369 = vadd.f32 %v1368, %v1241
    %v1370 = vadd.f32 %v1369, %v1242
    %v1371 = vadd.f32 %v1370, %v1243
    %v1372 = vadd.f32 %v1371, %v1244
    %v1373 = vadd.f32 %v1372, %v1245
    %v1374 = vadd.f32 %v1373, %v1246
    %v1375 = vadd.f32 %v1247, %v1374
    %1376 = vst [vmem:[%s2] sm:$0xff] %v1375
  $region21: #{_mse_mean_pallas.1} parent=0 // pred_fallthru
    _
  // Predicated region
  $region22: #{_mse_mean_pallas.1} parent=0 // pred_check
    _
  $region23: #{_mse_mean_pallas.1} parent=0 // pred_check_branch
    %1378 = sbr.rel (0) target = $region25
  $region24: #{_mse_mean_pallas.1} parent=0 // pred_region
    _
  $region25: #{_mse_mean_pallas.1} parent=0 // pred_fallthru
    _
  // Predicated region
  $region26: #{_mse_mean_pallas.1} parent=0 // pred_check
    _
  $region27: #{_mse_mean_pallas.1} parent=0 // pred_check_branch
    %1380 = sbr.rel (0) target = $region29
  $region28: #{_mse_mean_pallas.1} parent=0 // pred_region
    _
  $region29: #{_mse_mean_pallas.1} parent=0 // pred_fallthru
    _

</llo_original>
